<compile_context>
chip_gen: v5e
topology: v5e:2x2
jax: 0.10.0
libtpu: 0.0.40
codegen_flags: <defaults>
</compile_context>

<pallas_src>
import jax
import jax.numpy as jnp
from jax.experimental import pallas as pl
from jax.experimental.pallas import tpu as pltpu


# ----------------------------------------------------------------------------
# Fused kernel: both GRU recurrences (time loop unrolled in-kernel) + collapsed
# head.  No grid; all operands are tiny and fully VMEM-resident.
# ----------------------------------------------------------------------------
def fused_bigru_head_kernel(gi_f_ref, whh_f_ref, bhn_f_ref,
                            gi_b_ref, whh_b_ref, bhn_b_ref,
                            wh_f_ref, wh_b_ref, bh_ref, out_ref):
    # gi_*_ref : (3, T, B, H)  precomputed x @ W_ih^T (+ folded biases), per gate
    # whh_*_ref: (3, H, H)     per-gate recurrent weights, already transposed
    # bhn_*_ref: (1, H)        b_hn (stays inside the r-scaled term)
    # wh_*_ref : (H, C)        halves of the collapsed head weight
    # bh_ref   : (1, C)        collapsed head bias
    T = gi_f_ref.shape[1]
    B = gi_f_ref.shape[2]
    H = gi_f_ref.shape[3]

    def run_direction(gi_ref, whh_ref, bhn_ref, reverse):
        w_r = whh_ref[0]          # (H, H)
        w_z = whh_ref[1]
        w_n = whh_ref[2]
        b_n = bhn_ref[...]        # (1, H)
        h = jnp.zeros((B, H), jnp.float32)
        for s in range(T):        # static unrolled loop; T is tiny
            t = (T - 1 - s) if reverse else s   # backward GRU consumes flipped x
            gi_r = gi_ref[0, t]   # (B, H) static slices, lane-aligned
            gi_z = gi_ref[1, t]
            gi_n = gi_ref[2, t]
            gh_r = jnp.dot(h, w_r, preferred_element_type=jnp.float32)
            gh_z = jnp.dot(h, w_z, preferred_element_type=jnp.float32)
            gh_n = jnp.dot(h, w_n, preferred_element_type=jnp.float32) + b_n
            r = jax.nn.sigmoid(gi_r + gh_r)     # b_ir + b_hr already folded in gi_r
            z = jax.nn.sigmoid(gi_z + gh_z)     # b_iz + b_hz already folded in gi_z
            n = jnp.tanh(gi_n + r * gh_n)       # PyTorch GRU: b_hn inside r*(.)
            h = (1.0 - z) * n + z * h
        return h

    h_f = run_direction(gi_f_ref, whh_f_ref, bhn_f_ref, reverse=False)
    h_b = run_direction(gi_b_ref, whh_b_ref, bhn_b_ref, reverse=True)

    # Collapsed head: out = [h_f, h_b] @ W_comb^T + b_comb, with W_comb^T split
    # into forward/backward halves so no lane-concat is needed.
    out_ref[...] = (
        jnp.dot(h_f, wh_f_ref[...], preferred_element_type=jnp.float32)
        + jnp.dot(h_b, wh_b_ref[...], preferred_element_type=jnp.float32)
        + bh_ref[...]
    )


# ----------------------------------------------------------------------------
# Forward wrapper: hoisted input-side matmuls (one per direction) in XLA, then
# a single pallas_call for everything else.
# ----------------------------------------------------------------------------
def bigru_attention_forward(x, prep):
    """x: (B, T, input_dim) float32 (batch_first, like the PyTorch module)."""
    if x.ndim == 2:
        x = x[:, None, :]
    B, T, I = x.shape
    H = prep["whh_f_t"].shape[-1]
    C = prep["b_head"].shape[-1]

    def gi_all(wih_t, gi_bias):
        # One (B*T, I) x (I, 3H) matmul for ALL timesteps (hoisted out of the
        # recurrence), then split per gate and lay out time-major.
        gi = x.reshape(B * T, I) @ wih_t + gi_bias       # (B*T, 3H)
        gi = gi.reshape(B, T, 3, H)
        return jnp.transpose(gi, (2, 1, 0, 3))           # (3, T, B, H)

    gi_f = gi_all(prep["wih_f_t"], prep["gi_bias_f"])
    gi_b = gi_all(prep["wih_b_t"], prep["gi_bias_b"])    # backward gi is indexed
                                                         # reversed inside the kernel

    vmem = lambda: pl.BlockSpec(memory_space=pltpu.MemorySpace.VMEM)
    return pl.pallas_call(
        fused_bigru_head_kernel,
        out_shape=jax.ShapeDtypeStruct((B, C), jnp.float32),
        in_specs=[vmem() for _ in range(9)],
        out_specs=vmem(),
    )(gi_f, prep["whh_f_t"], prep["bhn_f"],
      gi_b, prep["whh_b_t"], prep["bhn_b"],
      prep["w_head_f_t"], prep["w_head_b_t"], prep["b_head"])


# ----------------------------------------------------------------------------
# Parameter preparation (done once, outside jit): transposes, per-gate split,
# bias folding, and algebraic collapse of the activation-free head.
# ----------------------------------------------------------------------------
def prepare_params(raw, hidden_dim):
    H = hidden_dim
    E = 2 * H

    def prep_dir(wih, whh, bih, bhh):
        # Fold b_hr, b_hz into the hoisted input-side bias; keep b_hn separate
        # (it is scaled by r in the PyTorch GRU n-gate).
        gi_bias = jnp.concatenate([bih[:H] + bhh[:H],
                                   bih[H:2 * H] + bhh[H:2 * H],
                                   bih[2 * H:]])
        whh_t = jnp.stack([whh[:H].T, whh[H:2 * H].T, whh[2 * H:].T])   # (3,H,H)
        return wih.T, gi_bias, whh_t, bhh[2 * H:][None, :]

    wih_f_t, gib_f, whh_f_t, bhn_f = prep_dir(raw["wih_f"], raw["whh_f"],
                                              raw["bih_f"], raw["bhh_f"])
    wih_b_t, gib_b, whh_b_t, bhn_b = prep_dir(raw["wih_b"], raw["whh_b"],
                                              raw["bih_b"], raw["bhh_b"])

    # Head collapse (exact at inference): seq_len==1 => softmax==1 => attention
    # output == out_proj(V);  out = cat @ Wv^T Wo^T Wp^T Wfc^T + b_comb.
    wv = raw["in_proj_w"][2 * E:]
    bv = raw["in_proj_b"][2 * E:]
    w_comb_t = wv.T @ raw["wo"].T @ raw["wp"].T @ raw["wfc"].T          # (E, C)
    b_comb = ((bv @ raw["wo"].T + raw["bo"]) @ raw["wp"].T + raw["bp"]) \
        @ raw["wfc"].T + raw["bfc"]                                     # (C,)

    return dict(
        wih_f_t=wih_f_t, gi_bias_f=gib_f, whh_f_t=whh_f_t, bhn_f=bhn_f,
        wih_b_t=wih_b_t, gi_bias_b=gib_b, whh_b_t=whh_b_t, bhn_b=bhn_b,
        w_head_f_t=w_comb_t[:H], w_head_b_t=w_comb_t[H:],
        b_head=b_comb[None, :],
    )


# ----------------------------------------------------------------------------
# Deterministic synthetic parameters (raw PyTorch-style shapes)
# ----------------------------------------------------------------------------
def init_params(key, input_dim, hidden_dim, num_classes):
    E = 2 * hidden_dim
    ks = jax.random.split(key, 16)
    u = lambda k, shape, scale: jax.random.uniform(k, shape, jnp.float32, -scale, scale)
    s_h = 1.0 / jnp.sqrt(hidden_dim)
    s_e = 1.0 / jnp.sqrt(E)
    return dict(
        # GRU weights (PyTorch: weight_ih (3H, I), weight_hh (3H, H), gates [r,z,n])
        wih_f=u(ks[0], (3 * hidden_dim, input_dim), s_h),
        whh_f=u(ks[1], (3 * hidden_dim, hidden_dim), s_h),
        bih_f=u(ks[2], (3 * hidden_dim,), s_h),
        bhh_f=u(ks[3], (3 * hidden_dim,), s_h),
        wih_b=u(ks[4], (3 * hidden_dim, input_dim), s_h),
        whh_b=u(ks[5], (3 * hidden_dim, hidden_dim), s_h),
        bih_b=u(ks[6], (3 * hidden_dim,), s_h),
        bhh_b=u(ks[7], (3 * hidden_dim,), s_h),
        # MultiheadAttention: in_proj (3E, E) [q;k;v]; only V matters for seq len 1.
        in_proj_w=u(ks[8], (3 * E, E), s_e),
        in_proj_b=u(ks[9], (3 * E,), s_e),
        wo=u(ks[10], (E, E), s_e), bo=u(ks[11], (E,), s_e),        # attn out_proj
        wp=u(ks[12], (E, E), s_e), bp=u(ks[13], (E,), s_e),        # projection Linear
        wfc=u(ks[14], (num_classes, E), s_e),                      # final fc
        bfc=u(ks[15], (num_classes,), s_e),
    )


# ----------------------------------------------------------------------------
# Pure-JAX reference (uncollapsed, straight from the PyTorch equations)
# ----------------------------------------------------------------------------
def gru_ref(x, wih, whh, bih, bhh):
    B, T, _ = x.shape
    H = whh.shape[1]
    h = jnp.zeros((B, H), jnp.float32)
    for t in range(T):
        gi = x[:, t] @ wih.T + bih
        gh = h @ whh.T + bhh
        r = jax.nn.sigmoid(gi[:, :H] + gh[:, :H])
        z = jax.nn.sigmoid(gi[:, H:2 * H] + gh[:, H:2 * H])
        n = jnp.tanh(gi[:, 2 * H:] + r * gh[:, 2 * H:])
        h = (1.0 - z) * n + z * h
    return h


def model_ref(x, raw, hidden_dim):
    E = 2 * hidden_dim
    h_f = gru_ref(x, raw["wih_f"], raw["whh_f"], raw["bih_f"], raw["bhh_f"])
    h_b = gru_ref(jnp.flip(x, axis=1), raw["wih_b"], raw["whh_b"],
                  raw["bih_b"], raw["bhh_b"])
    cat = jnp.concatenate([h_f, h_b], axis=1)
    wv = raw["in_proj_w"][2 * E:]
    bv = raw["in_proj_b"][2 * E:]
    v = cat @ wv.T + bv                      # softmax over a single key == 1
    attn = v @ raw["wo"].T + raw["bo"]
    proj = attn @ raw["wp"].T + raw["bp"]
    return proj @ raw["wfc"].T + raw["bfc"]


if __name__ == "__main__":
    B, T = 2, 8
    input_dim, hidden_dim, num_classes, num_heads = 16, 32, 4, 2
    # num_heads only affects the internal head split; output is identical for seq len 1.

    key = jax.random.PRNGKey(0)
    kx, kp = jax.random.split(key)
    x = jax.random.normal(kx, (B, T, input_dim), jnp.float32)
    raw = init_params(kp, input_dim, hidden_dim, num_classes)
    prep = prepare_params(raw, hidden_dim)

    fwd = jax.jit(bigru_attention_forward)
    out = jax.block_until_ready(fwd(x, prep))

    ref = model_ref(x, raw, hidden_dim)
    assert out.shape == (B, num_classes), out.shape
    assert jnp.allclose(out, ref, atol=5e-4, rtol=5e-4), (out, ref)

    print("KERNEL_OK")
</pallas_src>

<mosaic_0001>
module attributes {stable_mosaic.version = 11 : i64} {
  func.func @fused_bigru_head_kernel(%arg0: memref<3x8x2x32xf32, #tpu.memory_space<vmem>>, %arg1: memref<3x32x32xf32, #tpu.memory_space<vmem>>, %arg2: memref<1x32xf32, #tpu.memory_space<vmem>>, %arg3: memref<3x8x2x32xf32, #tpu.memory_space<vmem>>, %arg4: memref<3x32x32xf32, #tpu.memory_space<vmem>>, %arg5: memref<1x32xf32, #tpu.memory_space<vmem>>, %arg6: memref<32x4xf32, #tpu.memory_space<vmem>>, %arg7: memref<32x4xf32, #tpu.memory_space<vmem>>, %arg8: memref<1x4xf32, #tpu.memory_space<vmem>>, %arg9: memref<2x4xf32, #tpu.memory_space<vmem>>) attributes {dimension_semantics = [], scalar_prefetch = 0 : i64, scratch_operands = 0 : i64, tpu.core_type = #tpu.core_type<tc>} {
    %c0 = arith.constant 0 : index
    %c0_0 = arith.constant 0 : index
    %c0_1 = arith.constant 0 : index
    %0 = vector.load %arg1[%c0, %c0_0, %c0_1] : memref<3x32x32xf32, #tpu.memory_space<vmem>>, vector<1x32x32xf32>
    %1 = vector.shape_cast %0 : vector<1x32x32xf32> to vector<32x32xf32>
    %c1 = arith.constant 1 : index
    %c0_2 = arith.constant 0 : index
    %c0_3 = arith.constant 0 : index
    %2 = vector.load %arg1[%c1, %c0_2, %c0_3] : memref<3x32x32xf32, #tpu.memory_space<vmem>>, vector<1x32x32xf32>
    %3 = vector.shape_cast %2 : vector<1x32x32xf32> to vector<32x32xf32>
    %c2 = arith.constant 2 : index
    %c0_4 = arith.constant 0 : index
    %c0_5 = arith.constant 0 : index
    %4 = vector.load %arg1[%c2, %c0_4, %c0_5] : memref<3x32x32xf32, #tpu.memory_space<vmem>>, vector<1x32x32xf32>
    %5 = vector.shape_cast %4 : vector<1x32x32xf32> to vector<32x32xf32>
    %c0_6 = arith.constant 0 : index
    %c0_7 = arith.constant 0 : index
    %6 = vector.load %arg2[%c0_6, %c0_7] : memref<1x32xf32, #tpu.memory_space<vmem>>, vector<1x32xf32>
    %cst = arith.constant 0.000000e+00 : f32
    %7 = vector.broadcast %cst : f32 to vector<2x32xf32>
    %c0_8 = arith.constant 0 : index
    %c0_9 = arith.constant 0 : index
    %c0_10 = arith.constant 0 : index
    %c0_11 = arith.constant 0 : index
    %8 = vector.load %arg0[%c0_8, %c0_9, %c0_10, %c0_11] : memref<3x8x2x32xf32, #tpu.memory_space<vmem>>, vector<1x1x2x32xf32>
    %9 = vector.shape_cast %8 : vector<1x1x2x32xf32> to vector<2x32xf32>
    %c1_12 = arith.constant 1 : index
    %c0_13 = arith.constant 0 : index
    %c0_14 = arith.constant 0 : index
    %c0_15 = arith.constant 0 : index
    %10 = vector.load %arg0[%c1_12, %c0_13, %c0_14, %c0_15] : memref<3x8x2x32xf32, #tpu.memory_space<vmem>>, vector<1x1x2x32xf32>
    %11 = vector.shape_cast %10 : vector<1x1x2x32xf32> to vector<2x32xf32>
    %c2_16 = arith.constant 2 : index
    %c0_17 = arith.constant 0 : index
    %c0_18 = arith.constant 0 : index
    %c0_19 = arith.constant 0 : index
    %12 = vector.load %arg0[%c2_16, %c0_17, %c0_18, %c0_19] : memref<3x8x2x32xf32, #tpu.memory_space<vmem>>, vector<1x1x2x32xf32>
    %13 = vector.shape_cast %12 : vector<1x1x2x32xf32> to vector<2x32xf32>
    %cst_20 = arith.constant dense<0.000000e+00> : vector<2x32xf32>
    %14 = tpu.matmul %7, %1, %cst_20 {dimension_numbers = #tpu.dot_dimension_numbers<[1], [0], [0], [1], [0, 0, 1, 1], [], []>} : vector<2x32xf32>, vector<32x32xf32>, vector<2x32xf32> -> vector<2x32xf32>
    %cst_21 = arith.constant dense<0.000000e+00> : vector<2x32xf32>
    %15 = tpu.matmul %7, %3, %cst_21 {dimension_numbers = #tpu.dot_dimension_numbers<[1], [0], [0], [1], [0, 0, 1, 1], [], []>} : vector<2x32xf32>, vector<32x32xf32>, vector<2x32xf32> -> vector<2x32xf32>
    %cst_22 = arith.constant dense<0.000000e+00> : vector<2x32xf32>
    %16 = tpu.matmul %7, %5, %cst_22 {dimension_numbers = #tpu.dot_dimension_numbers<[1], [0], [0], [1], [0, 0, 1, 1], [], []>} : vector<2x32xf32>, vector<32x32xf32>, vector<2x32xf32> -> vector<2x32xf32>
    %17 = vector.broadcast %6 : vector<1x32xf32> to vector<2x32xf32>
    %18 = arith.addf %16, %17 : vector<2x32xf32>
    %19 = arith.addf %9, %14 : vector<2x32xf32>
    %20 = arith.negf %19 : vector<2x32xf32>
    %21 = math.exp %20 : vector<2x32xf32>
    %cst_23 = arith.constant 1.000000e+00 : f32
    %22 = vector.broadcast %cst_23 : f32 to vector<2x32xf32>
    %23 = arith.addf %22, %21 : vector<2x32xf32>
    %24 = arith.divf %22, %23 : vector<2x32xf32>
    %25 = arith.addf %11, %15 : vector<2x32xf32>
    %26 = arith.negf %25 : vector<2x32xf32>
    %27 = math.exp %26 : vector<2x32xf32>
    %cst_24 = arith.constant 1.000000e+00 : f32
    %28 = vector.broadcast %cst_24 : f32 to vector<2x32xf32>
    %29 = arith.addf %28, %27 : vector<2x32xf32>
    %30 = arith.divf %28, %29 : vector<2x32xf32>
    %31 = arith.mulf %24, %18 : vector<2x32xf32>
    %32 = arith.addf %13, %31 : vector<2x32xf32>
    %33 = math.tanh %32 : vector<2x32xf32>
    %cst_25 = arith.constant 1.000000e+00 : f32
    %34 = vector.broadcast %cst_25 : f32 to vector<2x32xf32>
    %35 = arith.subf %34, %30 : vector<2x32xf32>
    %36 = arith.mulf %35, %33 : vector<2x32xf32>
    %37 = arith.mulf %30, %7 : vector<2x32xf32>
    %38 = arith.addf %36, %37 : vector<2x32xf32>
    %c0_26 = arith.constant 0 : index
    %c1_27 = arith.constant 1 : index
    %c0_28 = arith.constant 0 : index
    %c0_29 = arith.constant 0 : index
    %39 = vector.load %arg0[%c0_26, %c1_27, %c0_28, %c0_29] : memref<3x8x2x32xf32, #tpu.memory_space<vmem>>, vector<1x1x2x32xf32>
    %40 = vector.shape_cast %39 : vector<1x1x2x32xf32> to vector<2x32xf32>
    %c1_30 = arith.constant 1 : index
    %c1_31 = arith.constant 1 : index
    %c0_32 = arith.constant 0 : index
    %c0_33 = arith.constant 0 : index
    %41 = vector.load %arg0[%c1_30, %c1_31, %c0_32, %c0_33] : memref<3x8x2x32xf32, #tpu.memory_space<vmem>>, vector<1x1x2x32xf32>
    %42 = vector.shape_cast %41 : vector<1x1x2x32xf32> to vector<2x32xf32>
    %c2_34 = arith.constant 2 : index
    %c1_35 = arith.constant 1 : index
    %c0_36 = arith.constant 0 : index
    %c0_37 = arith.constant 0 : index
    %43 = vector.load %arg0[%c2_34, %c1_35, %c0_36, %c0_37] : memref<3x8x2x32xf32, #tpu.memory_space<vmem>>, vector<1x1x2x32xf32>
    %44 = vector.shape_cast %43 : vector<1x1x2x32xf32> to vector<2x32xf32>
    %cst_38 = arith.constant dense<0.000000e+00> : vector<2x32xf32>
    %45 = tpu.matmul %38, %1, %cst_38 {dimension_numbers = #tpu.dot_dimension_numbers<[1], [0], [0], [1], [0, 0, 1, 1], [], []>} : vector<2x32xf32>, vector<32x32xf32>, vector<2x32xf32> -> vector<2x32xf32>
    %cst_39 = arith.constant dense<0.000000e+00> : vector<2x32xf32>
    %46 = tpu.matmul %38, %3, %cst_39 {dimension_numbers = #tpu.dot_dimension_numbers<[1], [0], [0], [1], [0, 0, 1, 1], [], []>} : vector<2x32xf32>, vector<32x32xf32>, vector<2x32xf32> -> vector<2x32xf32>
    %cst_40 = arith.constant dense<0.000000e+00> : vector<2x32xf32>
    %47 = tpu.matmul %38, %5, %cst_40 {dimension_numbers = #tpu.dot_dimension_numbers<[1], [0], [0], [1], [0, 0, 1, 1], [], []>} : vector<2x32xf32>, vector<32x32xf32>, vector<2x32xf32> -> vector<2x32xf32>
    %48 = vector.broadcast %6 : vector<1x32xf32> to vector<2x32xf32>
    %49 = arith.addf %47, %48 : vector<2x32xf32>
    %50 = arith.addf %40, %45 : vector<2x32xf32>
    %51 = arith.negf %50 : vector<2x32xf32>
    %52 = math.exp %51 : vector<2x32xf32>
    %cst_41 = arith.constant 1.000000e+00 : f32
    %53 = vector.broadcast %cst_41 : f32 to vector<2x32xf32>
    %54 = arith.addf %53, %52 : vector<2x32xf32>
    %55 = arith.divf %53, %54 : vector<2x32xf32>
    %56 = arith.addf %42, %46 : vector<2x32xf32>
    %57 = arith.negf %56 : vector<2x32xf32>
    %58 = math.exp %57 : vector<2x32xf32>
    %cst_42 = arith.constant 1.000000e+00 : f32
    %59 = vector.broadcast %cst_42 : f32 to vector<2x32xf32>
    %60 = arith.addf %59, %58 : vector<2x32xf32>
    %61 = arith.divf %59, %60 : vector<2x32xf32>
    %62 = arith.mulf %55, %49 : vector<2x32xf32>
    %63 = arith.addf %44, %62 : vector<2x32xf32>
    %64 = math.tanh %63 : vector<2x32xf32>
    %cst_43 = arith.constant 1.000000e+00 : f32
    %65 = vector.broadcast %cst_43 : f32 to vector<2x32xf32>
    %66 = arith.subf %65, %61 : vector<2x32xf32>
    %67 = arith.mulf %66, %64 : vector<2x32xf32>
    %68 = arith.mulf %61, %38 : vector<2x32xf32>
    %69 = arith.addf %67, %68 : vector<2x32xf32>
    %c0_44 = arith.constant 0 : index
    %c2_45 = arith.constant 2 : index
    %c0_46 = arith.constant 0 : index
    %c0_47 = arith.constant 0 : index
    %70 = vector.load %arg0[%c0_44, %c2_45, %c0_46, %c0_47] : memref<3x8x2x32xf32, #tpu.memory_space<vmem>>, vector<1x1x2x32xf32>
    %71 = vector.shape_cast %70 : vector<1x1x2x32xf32> to vector<2x32xf32>
    %c1_48 = arith.constant 1 : index
    %c2_49 = arith.constant 2 : index
    %c0_50 = arith.constant 0 : index
    %c0_51 = arith.constant 0 : index
    %72 = vector.load %arg0[%c1_48, %c2_49, %c0_50, %c0_51] : memref<3x8x2x32xf32, #tpu.memory_space<vmem>>, vector<1x1x2x32xf32>
    %73 = vector.shape_cast %72 : vector<1x1x2x32xf32> to vector<2x32xf32>
    %c2_52 = arith.constant 2 : index
    %c2_53 = arith.constant 2 : index
    %c0_54 = arith.constant 0 : index
    %c0_55 = arith.constant 0 : index
    %74 = vector.load %arg0[%c2_52, %c2_53, %c0_54, %c0_55] : memref<3x8x2x32xf32, #tpu.memory_space<vmem>>, vector<1x1x2x32xf32>
    %75 = vector.shape_cast %74 : vector<1x1x2x32xf32> to vector<2x32xf32>
    %cst_56 = arith.constant dense<0.000000e+00> : vector<2x32xf32>
    %76 = tpu.matmul %69, %1, %cst_56 {dimension_numbers = #tpu.dot_dimension_numbers<[1], [0], [0], [1], [0, 0, 1, 1], [], []>} : vector<2x32xf32>, vector<32x32xf32>, vector<2x32xf32> -> vector<2x32xf32>
    %cst_57 = arith.constant dense<0.000000e+00> : vector<2x32xf32>
    %77 = tpu.matmul %69, %3, %cst_57 {dimension_numbers = #tpu.dot_dimension_numbers<[1], [0], [0], [1], [0, 0, 1, 1], [], []>} : vector<2x32xf32>, vector<32x32xf32>, vector<2x32xf32> -> vector<2x32xf32>
    %cst_58 = arith.constant dense<0.000000e+00> : vector<2x32xf32>
    %78 = tpu.matmul %69, %5, %cst_58 {dimension_numbers = #tpu.dot_dimension_numbers<[1], [0], [0], [1], [0, 0, 1, 1], [], []>} : vector<2x32xf32>, vector<32x32xf32>, vector<2x32xf32> -> vector<2x32xf32>
    %79 = vector.broadcast %6 : vector<1x32xf32> to vector<2x32xf32>
    %80 = arith.addf %78, %79 : vector<2x32xf32>
    %81 = arith.addf %71, %76 : vector<2x32xf32>
    %82 = arith.negf %81 : vector<2x32xf32>
    %83 = math.exp %82 : vector<2x32xf32>
    %cst_59 = arith.constant 1.000000e+00 : f32
    %84 = vector.broadcast %cst_59 : f32 to vector<2x32xf32>
    %85 = arith.addf %84, %83 : vector<2x32xf32>
    %86 = arith.divf %84, %85 : vector<2x32xf32>
    %87 = arith.addf %73, %77 : vector<2x32xf32>
    %88 = arith.negf %87 : vector<2x32xf32>
    %89 = math.exp %88 : vector<2x32xf32>
    %cst_60 = arith.constant 1.000000e+00 : f32
    %90 = vector.broadcast %cst_60 : f32 to vector<2x32xf32>
    %91 = arith.addf %90, %89 : vector<2x32xf32>
    %92 = arith.divf %90, %91 : vector<2x32xf32>
    %93 = arith.mulf %86, %80 : vector<2x32xf32>
    %94 = arith.addf %75, %93 : vector<2x32xf32>
    %95 = math.tanh %94 : vector<2x32xf32>
    %cst_61 = arith.constant 1.000000e+00 : f32
    %96 = vector.broadcast %cst_61 : f32 to vector<2x32xf32>
    %97 = arith.subf %96, %92 : vector<2x32xf32>
    %98 = arith.mulf %97, %95 : vector<2x32xf32>
    %99 = arith.mulf %92, %69 : vector<2x32xf32>
    %100 = arith.addf %98, %99 : vector<2x32xf32>
    %c0_62 = arith.constant 0 : index
    %c3 = arith.constant 3 : index
    %c0_63 = arith.constant 0 : index
    %c0_64 = arith.constant 0 : index
    %101 = vector.load %arg0[%c0_62, %c3, %c0_63, %c0_64] : memref<3x8x2x32xf32, #tpu.memory_space<vmem>>, vector<1x1x2x32xf32>
    %102 = vector.shape_cast %101 : vector<1x1x2x32xf32> to vector<2x32xf32>
    %c1_65 = arith.constant 1 : index
    %c3_66 = arith.constant 3 : index
    %c0_67 = arith.constant 0 : index
    %c0_68 = arith.constant 0 : index
    %103 = vector.load %arg0[%c1_65, %c3_66, %c0_67, %c0_68] : memref<3x8x2x32xf32, #tpu.memory_space<vmem>>, vector<1x1x2x32xf32>
    %104 = vector.shape_cast %103 : vector<1x1x2x32xf32> to vector<2x32xf32>
    %c2_69 = arith.constant 2 : index
    %c3_70 = arith.constant 3 : index
    %c0_71 = arith.constant 0 : index
    %c0_72 = arith.constant 0 : index
    %105 = vector.load %arg0[%c2_69, %c3_70, %c0_71, %c0_72] : memref<3x8x2x32xf32, #tpu.memory_space<vmem>>, vector<1x1x2x32xf32>
    %106 = vector.shape_cast %105 : vector<1x1x2x32xf32> to vector<2x32xf32>
    %cst_73 = arith.constant dense<0.000000e+00> : vector<2x32xf32>
    %107 = tpu.matmul %100, %1, %cst_73 {dimension_numbers = #tpu.dot_dimension_numbers<[1], [0], [0], [1], [0, 0, 1, 1], [], []>} : vector<2x32xf32>, vector<32x32xf32>, vector<2x32xf32> -> vector<2x32xf32>
    %cst_74 = arith.constant dense<0.000000e+00> : vector<2x32xf32>
    %108 = tpu.matmul %100, %3, %cst_74 {dimension_numbers = #tpu.dot_dimension_numbers<[1], [0], [0], [1], [0, 0, 1, 1], [], []>} : vector<2x32xf32>, vector<32x32xf32>, vector<2x32xf32> -> vector<2x32xf32>
    %cst_75 = arith.constant dense<0.000000e+00> : vector<2x32xf32>
    %109 = tpu.matmul %100, %5, %cst_75 {dimension_numbers = #tpu.dot_dimension_numbers<[1], [0], [0], [1], [0, 0, 1, 1], [], []>} : vector<2x32xf32>, vector<32x32xf32>, vector<2x32xf32> -> vector<2x32xf32>
    %110 = vector.broadcast %6 : vector<1x32xf32> to vector<2x32xf32>
    %111 = arith.addf %109, %110 : vector<2x32xf32>
    %112 = arith.addf %102, %107 : vector<2x32xf32>
    %113 = arith.negf %112 : vector<2x32xf32>
    %114 = math.exp %113 : vector<2x32xf32>
    %cst_76 = arith.constant 1.000000e+00 : f32
    %115 = vector.broadcast %cst_76 : f32 to vector<2x32xf32>
    %116 = arith.addf %115, %114 : vector<2x32xf32>
    %117 = arith.divf %115, %116 : vector<2x32xf32>
    %118 = arith.addf %104, %108 : vector<2x32xf32>
    %119 = arith.negf %118 : vector<2x32xf32>
    %120 = math.exp %119 : vector<2x32xf32>
    %cst_77 = arith.constant 1.000000e+00 : f32
    %121 = vector.broadcast %cst_77 : f32 to vector<2x32xf32>
    %122 = arith.addf %121, %120 : vector<2x32xf32>
    %123 = arith.divf %121, %122 : vector<2x32xf32>
    %124 = arith.mulf %117, %111 : vector<2x32xf32>
    %125 = arith.addf %106, %124 : vector<2x32xf32>
    %126 = math.tanh %125 : vector<2x32xf32>
    %cst_78 = arith.constant 1.000000e+00 : f32
    %127 = vector.broadcast %cst_78 : f32 to vector<2x32xf32>
    %128 = arith.subf %127, %123 : vector<2x32xf32>
    %129 = arith.mulf %128, %126 : vector<2x32xf32>
    %130 = arith.mulf %123, %100 : vector<2x32xf32>
    %131 = arith.addf %129, %130 : vector<2x32xf32>
    %c0_79 = arith.constant 0 : index
    %c4 = arith.constant 4 : index
    %c0_80 = arith.constant 0 : index
    %c0_81 = arith.constant 0 : index
    %132 = vector.load %arg0[%c0_79, %c4, %c0_80, %c0_81] : memref<3x8x2x32xf32, #tpu.memory_space<vmem>>, vector<1x1x2x32xf32>
    %133 = vector.shape_cast %132 : vector<1x1x2x32xf32> to vector<2x32xf32>
    %c1_82 = arith.constant 1 : index
    %c4_83 = arith.constant 4 : index
    %c0_84 = arith.constant 0 : index
    %c0_85 = arith.constant 0 : index
    %134 = vector.load %arg0[%c1_82, %c4_83, %c0_84, %c0_85] : memref<3x8x2x32xf32, #tpu.memory_space<vmem>>, vector<1x1x2x32xf32>
    %135 = vector.shape_cast %134 : vector<1x1x2x32xf32> to vector<2x32xf32>
    %c2_86 = arith.constant 2 : index
    %c4_87 = arith.constant 4 : index
    %c0_88 = arith.constant 0 : index
    %c0_89 = arith.constant 0 : index
    %136 = vector.load %arg0[%c2_86, %c4_87, %c0_88, %c0_89] : memref<3x8x2x32xf32, #tpu.memory_space<vmem>>, vector<1x1x2x32xf32>
    %137 = vector.shape_cast %136 : vector<1x1x2x32xf32> to vector<2x32xf32>
    %cst_90 = arith.constant dense<0.000000e+00> : vector<2x32xf32>
    %138 = tpu.matmul %131, %1, %cst_90 {dimension_numbers = #tpu.dot_dimension_numbers<[1], [0], [0], [1], [0, 0, 1, 1], [], []>} : vector<2x32xf32>, vector<32x32xf32>, vector<2x32xf32> -> vector<2x32xf32>
    %cst_91 = arith.constant dense<0.000000e+00> : vector<2x32xf32>
    %139 = tpu.matmul %131, %3, %cst_91 {dimension_numbers = #tpu.dot_dimension_numbers<[1], [0], [0], [1], [0, 0, 1, 1], [], []>} : vector<2x32xf32>, vector<32x32xf32>, vector<2x32xf32> -> vector<2x32xf32>
    %cst_92 = arith.constant dense<0.000000e+00> : vector<2x32xf32>
    %140 = tpu.matmul %131, %5, %cst_92 {dimension_numbers = #tpu.dot_dimension_numbers<[1], [0], [0], [1], [0, 0, 1, 1], [], []>} : vector<2x32xf32>, vector<32x32xf32>, vector<2x32xf32> -> vector<2x32xf32>
    %141 = vector.broadcast %6 : vector<1x32xf32> to vector<2x32xf32>
    %142 = arith.addf %140, %141 : vector<2x32xf32>
    %143 = arith.addf %133, %138 : vector<2x32xf32>
    %144 = arith.negf %143 : vector<2x32xf32>
    %145 = math.exp %144 : vector<2x32xf32>
    %cst_93 = arith.constant 1.000000e+00 : f32
    %146 = vector.broadcast %cst_93 : f32 to vector<2x32xf32>
    %147 = arith.addf %146, %145 : vector<2x32xf32>
    %148 = arith.divf %146, %147 : vector<2x32xf32>
    %149 = arith.addf %135, %139 : vector<2x32xf32>
    %150 = arith.negf %149 : vector<2x32xf32>
    %151 = math.exp %150 : vector<2x32xf32>
    %cst_94 = arith.constant 1.000000e+00 : f32
    %152 = vector.broadcast %cst_94 : f32 to vector<2x32xf32>
    %153 = arith.addf %152, %151 : vector<2x32xf32>
    %154 = arith.divf %152, %153 : vector<2x32xf32>
    %155 = arith.mulf %148, %142 : vector<2x32xf32>
    %156 = arith.addf %137, %155 : vector<2x32xf32>
    %157 = math.tanh %156 : vector<2x32xf32>
    %cst_95 = arith.constant 1.000000e+00 : f32
    %158 = vector.broadcast %cst_95 : f32 to vector<2x32xf32>
    %159 = arith.subf %158, %154 : vector<2x32xf32>
    %160 = arith.mulf %159, %157 : vector<2x32xf32>
    %161 = arith.mulf %154, %131 : vector<2x32xf32>
    %162 = arith.addf %160, %161 : vector<2x32xf32>
    %c0_96 = arith.constant 0 : index
    %c5 = arith.constant 5 : index
    %c0_97 = arith.constant 0 : index
    %c0_98 = arith.constant 0 : index
    %163 = vector.load %arg0[%c0_96, %c5, %c0_97, %c0_98] : memref<3x8x2x32xf32, #tpu.memory_space<vmem>>, vector<1x1x2x32xf32>
    %164 = vector.shape_cast %163 : vector<1x1x2x32xf32> to vector<2x32xf32>
    %c1_99 = arith.constant 1 : index
    %c5_100 = arith.constant 5 : index
    %c0_101 = arith.constant 0 : index
    %c0_102 = arith.constant 0 : index
    %165 = vector.load %arg0[%c1_99, %c5_100, %c0_101, %c0_102] : memref<3x8x2x32xf32, #tpu.memory_space<vmem>>, vector<1x1x2x32xf32>
    %166 = vector.shape_cast %165 : vector<1x1x2x32xf32> to vector<2x32xf32>
    %c2_103 = arith.constant 2 : index
    %c5_104 = arith.constant 5 : index
    %c0_105 = arith.constant 0 : index
    %c0_106 = arith.constant 0 : index
    %167 = vector.load %arg0[%c2_103, %c5_104, %c0_105, %c0_106] : memref<3x8x2x32xf32, #tpu.memory_space<vmem>>, vector<1x1x2x32xf32>
    %168 = vector.shape_cast %167 : vector<1x1x2x32xf32> to vector<2x32xf32>
    %cst_107 = arith.constant dense<0.000000e+00> : vector<2x32xf32>
    %169 = tpu.matmul %162, %1, %cst_107 {dimension_numbers = #tpu.dot_dimension_numbers<[1], [0], [0], [1], [0, 0, 1, 1], [], []>} : vector<2x32xf32>, vector<32x32xf32>, vector<2x32xf32> -> vector<2x32xf32>
    %cst_108 = arith.constant dense<0.000000e+00> : vector<2x32xf32>
    %170 = tpu.matmul %162, %3, %cst_108 {dimension_numbers = #tpu.dot_dimension_numbers<[1], [0], [0], [1], [0, 0, 1, 1], [], []>} : vector<2x32xf32>, vector<32x32xf32>, vector<2x32xf32> -> vector<2x32xf32>
    %cst_109 = arith.constant dense<0.000000e+00> : vector<2x32xf32>
    %171 = tpu.matmul %162, %5, %cst_109 {dimension_numbers = #tpu.dot_dimension_numbers<[1], [0], [0], [1], [0, 0, 1, 1], [], []>} : vector<2x32xf32>, vector<32x32xf32>, vector<2x32xf32> -> vector<2x32xf32>
    %172 = vector.broadcast %6 : vector<1x32xf32> to vector<2x32xf32>
    %173 = arith.addf %171, %172 : vector<2x32xf32>
    %174 = arith.addf %164, %169 : vector<2x32xf32>
    %175 = arith.negf %174 : vector<2x32xf32>
    %176 = math.exp %175 : vector<2x32xf32>
    %cst_110 = arith.constant 1.000000e+00 : f32
    %177 = vector.broadcast %cst_110 : f32 to vector<2x32xf32>
    %178 = arith.addf %177, %176 : vector<2x32xf32>
    %179 = arith.divf %177, %178 : vector<2x32xf32>
    %180 = arith.addf %166, %170 : vector<2x32xf32>
    %181 = arith.negf %180 : vector<2x32xf32>
    %182 = math.exp %181 : vector<2x32xf32>
    %cst_111 = arith.constant 1.000000e+00 : f32
    %183 = vector.broadcast %cst_111 : f32 to vector<2x32xf32>
    %184 = arith.addf %183, %182 : vector<2x32xf32>
    %185 = arith.divf %183, %184 : vector<2x32xf32>
    %186 = arith.mulf %179, %173 : vector<2x32xf32>
    %187 = arith.addf %168, %186 : vector<2x32xf32>
    %188 = math.tanh %187 : vector<2x32xf32>
    %cst_112 = arith.constant 1.000000e+00 : f32
    %189 = vector.broadcast %cst_112 : f32 to vector<2x32xf32>
    %190 = arith.subf %189, %185 : vector<2x32xf32>
    %191 = arith.mulf %190, %188 : vector<2x32xf32>
    %192 = arith.mulf %185, %162 : vector<2x32xf32>
    %193 = arith.addf %191, %192 : vector<2x32xf32>
    %c0_113 = arith.constant 0 : index
    %c6 = arith.constant 6 : index
    %c0_114 = arith.constant 0 : index
    %c0_115 = arith.constant 0 : index
    %194 = vector.load %arg0[%c0_113, %c6, %c0_114, %c0_115] : memref<3x8x2x32xf32, #tpu.memory_space<vmem>>, vector<1x1x2x32xf32>
    %195 = vector.shape_cast %194 : vector<1x1x2x32xf32> to vector<2x32xf32>
    %c1_116 = arith.constant 1 : index
    %c6_117 = arith.constant 6 : index
    %c0_118 = arith.constant 0 : index
    %c0_119 = arith.constant 0 : index
    %196 = vector.load %arg0[%c1_116, %c6_117, %c0_118, %c0_119] : memref<3x8x2x32xf32, #tpu.memory_space<vmem>>, vector<1x1x2x32xf32>
    %197 = vector.shape_cast %196 : vector<1x1x2x32xf32> to vector<2x32xf32>
    %c2_120 = arith.constant 2 : index
    %c6_121 = arith.constant 6 : index
    %c0_122 = arith.constant 0 : index
    %c0_123 = arith.constant 0 : index
    %198 = vector.load %arg0[%c2_120, %c6_121, %c0_122, %c0_123] : memref<3x8x2x32xf32, #tpu.memory_space<vmem>>, vector<1x1x2x32xf32>
    %199 = vector.shape_cast %198 : vector<1x1x2x32xf32> to vector<2x32xf32>
    %cst_124 = arith.constant dense<0.000000e+00> : vector<2x32xf32>
    %200 = tpu.matmul %193, %1, %cst_124 {dimension_numbers = #tpu.dot_dimension_numbers<[1], [0], [0], [1], [0, 0, 1, 1], [], []>} : vector<2x32xf32>, vector<32x32xf32>, vector<2x32xf32> -> vector<2x32xf32>
    %cst_125 = arith.constant dense<0.000000e+00> : vector<2x32xf32>
    %201 = tpu.matmul %193, %3, %cst_125 {dimension_numbers = #tpu.dot_dimension_numbers<[1], [0], [0], [1], [0, 0, 1, 1], [], []>} : vector<2x32xf32>, vector<32x32xf32>, vector<2x32xf32> -> vector<2x32xf32>
    %cst_126 = arith.constant dense<0.000000e+00> : vector<2x32xf32>
    %202 = tpu.matmul %193, %5, %cst_126 {dimension_numbers = #tpu.dot_dimension_numbers<[1], [0], [0], [1], [0, 0, 1, 1], [], []>} : vector<2x32xf32>, vector<32x32xf32>, vector<2x32xf32> -> vector<2x32xf32>
    %203 = vector.broadcast %6 : vector<1x32xf32> to vector<2x32xf32>
    %204 = arith.addf %202, %203 : vector<2x32xf32>
    %205 = arith.addf %195, %200 : vector<2x32xf32>
    %206 = arith.negf %205 : vector<2x32xf32>
    %207 = math.exp %206 : vector<2x32xf32>
    %cst_127 = arith.constant 1.000000e+00 : f32
    %208 = vector.broadcast %cst_127 : f32 to vector<2x32xf32>
    %209 = arith.addf %208, %207 : vector<2x32xf32>
    %210 = arith.divf %208, %209 : vector<2x32xf32>
    %211 = arith.addf %197, %201 : vector<2x32xf32>
    %212 = arith.negf %211 : vector<2x32xf32>
    %213 = math.exp %212 : vector<2x32xf32>
    %cst_128 = arith.constant 1.000000e+00 : f32
    %214 = vector.broadcast %cst_128 : f32 to vector<2x32xf32>
    %215 = arith.addf %214, %213 : vector<2x32xf32>
    %216 = arith.divf %214, %215 : vector<2x32xf32>
    %217 = arith.mulf %210, %204 : vector<2x32xf32>
    %218 = arith.addf %199, %217 : vector<2x32xf32>
    %219 = math.tanh %218 : vector<2x32xf32>
    %cst_129 = arith.constant 1.000000e+00 : f32
    %220 = vector.broadcast %cst_129 : f32 to vector<2x32xf32>
    %221 = arith.subf %220, %216 : vector<2x32xf32>
    %222 = arith.mulf %221, %219 : vector<2x32xf32>
    %223 = arith.mulf %216, %193 : vector<2x32xf32>
    %224 = arith.addf %222, %223 : vector<2x32xf32>
    %c0_130 = arith.constant 0 : index
    %c7 = arith.constant 7 : index
    %c0_131 = arith.constant 0 : index
    %c0_132 = arith.constant 0 : index
    %225 = vector.load %arg0[%c0_130, %c7, %c0_131, %c0_132] : memref<3x8x2x32xf32, #tpu.memory_space<vmem>>, vector<1x1x2x32xf32>
    %226 = vector.shape_cast %225 : vector<1x1x2x32xf32> to vector<2x32xf32>
    %c1_133 = arith.constant 1 : index
    %c7_134 = arith.constant 7 : index
    %c0_135 = arith.constant 0 : index
    %c0_136 = arith.constant 0 : index
    %227 = vector.load %arg0[%c1_133, %c7_134, %c0_135, %c0_136] : memref<3x8x2x32xf32, #tpu.memory_space<vmem>>, vector<1x1x2x32xf32>
    %228 = vector.shape_cast %227 : vector<1x1x2x32xf32> to vector<2x32xf32>
    %c2_137 = arith.constant 2 : index
    %c7_138 = arith.constant 7 : index
    %c0_139 = arith.constant 0 : index
    %c0_140 = arith.constant 0 : index
    %229 = vector.load %arg0[%c2_137, %c7_138, %c0_139, %c0_140] : memref<3x8x2x32xf32, #tpu.memory_space<vmem>>, vector<1x1x2x32xf32>
    %230 = vector.shape_cast %229 : vector<1x1x2x32xf32> to vector<2x32xf32>
    %cst_141 = arith.constant dense<0.000000e+00> : vector<2x32xf32>
    %231 = tpu.matmul %224, %1, %cst_141 {dimension_numbers = #tpu.dot_dimension_numbers<[1], [0], [0], [1], [0, 0, 1, 1], [], []>} : vector<2x32xf32>, vector<32x32xf32>, vector<2x32xf32> -> vector<2x32xf32>
    %cst_142 = arith.constant dense<0.000000e+00> : vector<2x32xf32>
    %232 = tpu.matmul %224, %3, %cst_142 {dimension_numbers = #tpu.dot_dimension_numbers<[1], [0], [0], [1], [0, 0, 1, 1], [], []>} : vector<2x32xf32>, vector<32x32xf32>, vector<2x32xf32> -> vector<2x32xf32>
    %cst_143 = arith.constant dense<0.000000e+00> : vector<2x32xf32>
    %233 = tpu.matmul %224, %5, %cst_143 {dimension_numbers = #tpu.dot_dimension_numbers<[1], [0], [0], [1], [0, 0, 1, 1], [], []>} : vector<2x32xf32>, vector<32x32xf32>, vector<2x32xf32> -> vector<2x32xf32>
    %234 = vector.broadcast %6 : vector<1x32xf32> to vector<2x32xf32>
    %235 = arith.addf %233, %234 : vector<2x32xf32>
    %236 = arith.addf %226, %231 : vector<2x32xf32>
    %237 = arith.negf %236 : vector<2x32xf32>
    %238 = math.exp %237 : vector<2x32xf32>
    %cst_144 = arith.constant 1.000000e+00 : f32
    %239 = vector.broadcast %cst_144 : f32 to vector<2x32xf32>
    %240 = arith.addf %239, %238 : vector<2x32xf32>
    %241 = arith.divf %239, %240 : vector<2x32xf32>
    %242 = arith.addf %228, %232 : vector<2x32xf32>
    %243 = arith.negf %242 : vector<2x32xf32>
    %244 = math.exp %243 : vector<2x32xf32>
    %cst_145 = arith.constant 1.000000e+00 : f32
    %245 = vector.broadcast %cst_145 : f32 to vector<2x32xf32>
    %246 = arith.addf %245, %244 : vector<2x32xf32>
    %247 = arith.divf %245, %246 : vector<2x32xf32>
    %248 = arith.mulf %241, %235 : vector<2x32xf32>
    %249 = arith.addf %230, %248 : vector<2x32xf32>
    %250 = math.tanh %249 : vector<2x32xf32>
    %cst_146 = arith.constant 1.000000e+00 : f32
    %251 = vector.broadcast %cst_146 : f32 to vector<2x32xf32>
    %252 = arith.subf %251, %247 : vector<2x32xf32>
    %253 = arith.mulf %252, %250 : vector<2x32xf32>
    %254 = arith.mulf %247, %224 : vector<2x32xf32>
    %255 = arith.addf %253, %254 : vector<2x32xf32>
    %c0_147 = arith.constant 0 : index
    %c0_148 = arith.constant 0 : index
    %c0_149 = arith.constant 0 : index
    %256 = vector.load %arg4[%c0_147, %c0_148, %c0_149] : memref<3x32x32xf32, #tpu.memory_space<vmem>>, vector<1x32x32xf32>
    %257 = vector.shape_cast %256 : vector<1x32x32xf32> to vector<32x32xf32>
    %c1_150 = arith.constant 1 : index
    %c0_151 = arith.constant 0 : index
    %c0_152 = arith.constant 0 : index
    %258 = vector.load %arg4[%c1_150, %c0_151, %c0_152] : memref<3x32x32xf32, #tpu.memory_space<vmem>>, vector<1x32x32xf32>
    %259 = vector.shape_cast %258 : vector<1x32x32xf32> to vector<32x32xf32>
    %c2_153 = arith.constant 2 : index
    %c0_154 = arith.constant 0 : index
    %c0_155 = arith.constant 0 : index
    %260 = vector.load %arg4[%c2_153, %c0_154, %c0_155] : memref<3x32x32xf32, #tpu.memory_space<vmem>>, vector<1x32x32xf32>
    %261 = vector.shape_cast %260 : vector<1x32x32xf32> to vector<32x32xf32>
    %c0_156 = arith.constant 0 : index
    %c0_157 = arith.constant 0 : index
    %262 = vector.load %arg5[%c0_156, %c0_157] : memref<1x32xf32, #tpu.memory_space<vmem>>, vector<1x32xf32>
    %cst_158 = arith.constant 0.000000e+00 : f32
    %263 = vector.broadcast %cst_158 : f32 to vector<2x32xf32>
    %c0_159 = arith.constant 0 : index
    %c7_160 = arith.constant 7 : index
    %c0_161 = arith.constant 0 : index
    %c0_162 = arith.constant 0 : index
    %264 = vector.load %arg3[%c0_159, %c7_160, %c0_161, %c0_162] : memref<3x8x2x32xf32, #tpu.memory_space<vmem>>, vector<1x1x2x32xf32>
    %265 = vector.shape_cast %264 : vector<1x1x2x32xf32> to vector<2x32xf32>
    %c1_163 = arith.constant 1 : index
    %c7_164 = arith.constant 7 : index
    %c0_165 = arith.constant 0 : index
    %c0_166 = arith.constant 0 : index
    %266 = vector.load %arg3[%c1_163, %c7_164, %c0_165, %c0_166] : memref<3x8x2x32xf32, #tpu.memory_space<vmem>>, vector<1x1x2x32xf32>
    %267 = vector.shape_cast %266 : vector<1x1x2x32xf32> to vector<2x32xf32>
    %c2_167 = arith.constant 2 : index
    %c7_168 = arith.constant 7 : index
    %c0_169 = arith.constant 0 : index
    %c0_170 = arith.constant 0 : index
    %268 = vector.load %arg3[%c2_167, %c7_168, %c0_169, %c0_170] : memref<3x8x2x32xf32, #tpu.memory_space<vmem>>, vector<1x1x2x32xf32>
    %269 = vector.shape_cast %268 : vector<1x1x2x32xf32> to vector<2x32xf32>
    %cst_171 = arith.constant dense<0.000000e+00> : vector<2x32xf32>
    %270 = tpu.matmul %263, %257, %cst_171 {dimension_numbers = #tpu.dot_dimension_numbers<[1], [0], [0], [1], [0, 0, 1, 1], [], []>} : vector<2x32xf32>, vector<32x32xf32>, vector<2x32xf32> -> vector<2x32xf32>
    %cst_172 = arith.constant dense<0.000000e+00> : vector<2x32xf32>
    %271 = tpu.matmul %263, %259, %cst_172 {dimension_numbers = #tpu.dot_dimension_numbers<[1], [0], [0], [1], [0, 0, 1, 1], [], []>} : vector<2x32xf32>, vector<32x32xf32>, vector<2x32xf32> -> vector<2x32xf32>
    %cst_173 = arith.constant dense<0.000000e+00> : vector<2x32xf32>
    %272 = tpu.matmul %263, %261, %cst_173 {dimension_numbers = #tpu.dot_dimension_numbers<[1], [0], [0], [1], [0, 0, 1, 1], [], []>} : vector<2x32xf32>, vector<32x32xf32>, vector<2x32xf32> -> vector<2x32xf32>
    %273 = vector.broadcast %262 : vector<1x32xf32> to vector<2x32xf32>
    %274 = arith.addf %272, %273 : vector<2x32xf32>
    %275 = arith.addf %265, %270 : vector<2x32xf32>
    %276 = arith.negf %275 : vector<2x32xf32>
    %277 = math.exp %276 : vector<2x32xf32>
    %cst_174 = arith.constant 1.000000e+00 : f32
    %278 = vector.broadcast %cst_174 : f32 to vector<2x32xf32>
    %279 = arith.addf %278, %277 : vector<2x32xf32>
    %280 = arith.divf %278, %279 : vector<2x32xf32>
    %281 = arith.addf %267, %271 : vector<2x32xf32>
    %282 = arith.negf %281 : vector<2x32xf32>
    %283 = math.exp %282 : vector<2x32xf32>
    %cst_175 = arith.constant 1.000000e+00 : f32
    %284 = vector.broadcast %cst_175 : f32 to vector<2x32xf32>
    %285 = arith.addf %284, %283 : vector<2x32xf32>
    %286 = arith.divf %284, %285 : vector<2x32xf32>
    %287 = arith.mulf %280, %274 : vector<2x32xf32>
    %288 = arith.addf %269, %287 : vector<2x32xf32>
    %289 = math.tanh %288 : vector<2x32xf32>
    %cst_176 = arith.constant 1.000000e+00 : f32
    %290 = vector.broadcast %cst_176 : f32 to vector<2x32xf32>
    %291 = arith.subf %290, %286 : vector<2x32xf32>
    %292 = arith.mulf %291, %289 : vector<2x32xf32>
    %293 = arith.mulf %286, %263 : vector<2x32xf32>
    %294 = arith.addf %292, %293 : vector<2x32xf32>
    %c0_177 = arith.constant 0 : index
    %c6_178 = arith.constant 6 : index
    %c0_179 = arith.constant 0 : index
    %c0_180 = arith.constant 0 : index
    %295 = vector.load %arg3[%c0_177, %c6_178, %c0_179, %c0_180] : memref<3x8x2x32xf32, #tpu.memory_space<vmem>>, vector<1x1x2x32xf32>
    %296 = vector.shape_cast %295 : vector<1x1x2x32xf32> to vector<2x32xf32>
    %c1_181 = arith.constant 1 : index
    %c6_182 = arith.constant 6 : index
    %c0_183 = arith.constant 0 : index
    %c0_184 = arith.constant 0 : index
    %297 = vector.load %arg3[%c1_181, %c6_182, %c0_183, %c0_184] : memref<3x8x2x32xf32, #tpu.memory_space<vmem>>, vector<1x1x2x32xf32>
    %298 = vector.shape_cast %297 : vector<1x1x2x32xf32> to vector<2x32xf32>
    %c2_185 = arith.constant 2 : index
    %c6_186 = arith.constant 6 : index
    %c0_187 = arith.constant 0 : index
    %c0_188 = arith.constant 0 : index
    %299 = vector.load %arg3[%c2_185, %c6_186, %c0_187, %c0_188] : memref<3x8x2x32xf32, #tpu.memory_space<vmem>>, vector<1x1x2x32xf32>
    %300 = vector.shape_cast %299 : vector<1x1x2x32xf32> to vector<2x32xf32>
    %cst_189 = arith.constant dense<0.000000e+00> : vector<2x32xf32>
    %301 = tpu.matmul %294, %257, %cst_189 {dimension_numbers = #tpu.dot_dimension_numbers<[1], [0], [0], [1], [0, 0, 1, 1], [], []>} : vector<2x32xf32>, vector<32x32xf32>, vector<2x32xf32> -> vector<2x32xf32>
    %cst_190 = arith.constant dense<0.000000e+00> : vector<2x32xf32>
    %302 = tpu.matmul %294, %259, %cst_190 {dimension_numbers = #tpu.dot_dimension_numbers<[1], [0], [0], [1], [0, 0, 1, 1], [], []>} : vector<2x32xf32>, vector<32x32xf32>, vector<2x32xf32> -> vector<2x32xf32>
    %cst_191 = arith.constant dense<0.000000e+00> : vector<2x32xf32>
    %303 = tpu.matmul %294, %261, %cst_191 {dimension_numbers = #tpu.dot_dimension_numbers<[1], [0], [0], [1], [0, 0, 1, 1], [], []>} : vector<2x32xf32>, vector<32x32xf32>, vector<2x32xf32> -> vector<2x32xf32>
    %304 = vector.broadcast %262 : vector<1x32xf32> to vector<2x32xf32>
    %305 = arith.addf %303, %304 : vector<2x32xf32>
    %306 = arith.addf %296, %301 : vector<2x32xf32>
    %307 = arith.negf %306 : vector<2x32xf32>
    %308 = math.exp %307 : vector<2x32xf32>
    %cst_192 = arith.constant 1.000000e+00 : f32
    %309 = vector.broadcast %cst_192 : f32 to vector<2x32xf32>
    %310 = arith.addf %309, %308 : vector<2x32xf32>
    %311 = arith.divf %309, %310 : vector<2x32xf32>
    %312 = arith.addf %298, %302 : vector<2x32xf32>
    %313 = arith.negf %312 : vector<2x32xf32>
    %314 = math.exp %313 : vector<2x32xf32>
    %cst_193 = arith.constant 1.000000e+00 : f32
    %315 = vector.broadcast %cst_193 : f32 to vector<2x32xf32>
    %316 = arith.addf %315, %314 : vector<2x32xf32>
    %317 = arith.divf %315, %316 : vector<2x32xf32>
    %318 = arith.mulf %311, %305 : vector<2x32xf32>
    %319 = arith.addf %300, %318 : vector<2x32xf32>
    %320 = math.tanh %319 : vector<2x32xf32>
    %cst_194 = arith.constant 1.000000e+00 : f32
    %321 = vector.broadcast %cst_194 : f32 to vector<2x32xf32>
    %322 = arith.subf %321, %317 : vector<2x32xf32>
    %323 = arith.mulf %322, %320 : vector<2x32xf32>
    %324 = arith.mulf %317, %294 : vector<2x32xf32>
    %325 = arith.addf %323, %324 : vector<2x32xf32>
    %c0_195 = arith.constant 0 : index
    %c5_196 = arith.constant 5 : index
    %c0_197 = arith.constant 0 : index
    %c0_198 = arith.constant 0 : index
    %326 = vector.load %arg3[%c0_195, %c5_196, %c0_197, %c0_198] : memref<3x8x2x32xf32, #tpu.memory_space<vmem>>, vector<1x1x2x32xf32>
    %327 = vector.shape_cast %326 : vector<1x1x2x32xf32> to vector<2x32xf32>
    %c1_199 = arith.constant 1 : index
    %c5_200 = arith.constant 5 : index
    %c0_201 = arith.constant 0 : index
    %c0_202 = arith.constant 0 : index
    %328 = vector.load %arg3[%c1_199, %c5_200, %c0_201, %c0_202] : memref<3x8x2x32xf32, #tpu.memory_space<vmem>>, vector<1x1x2x32xf32>
    %329 = vector.shape_cast %328 : vector<1x1x2x32xf32> to vector<2x32xf32>
    %c2_203 = arith.constant 2 : index
    %c5_204 = arith.constant 5 : index
    %c0_205 = arith.constant 0 : index
    %c0_206 = arith.constant 0 : index
    %330 = vector.load %arg3[%c2_203, %c5_204, %c0_205, %c0_206] : memref<3x8x2x32xf32, #tpu.memory_space<vmem>>, vector<1x1x2x32xf32>
    %331 = vector.shape_cast %330 : vector<1x1x2x32xf32> to vector<2x32xf32>
    %cst_207 = arith.constant dense<0.000000e+00> : vector<2x32xf32>
    %332 = tpu.matmul %325, %257, %cst_207 {dimension_numbers = #tpu.dot_dimension_numbers<[1], [0], [0], [1], [0, 0, 1, 1], [], []>} : vector<2x32xf32>, vector<32x32xf32>, vector<2x32xf32> -> vector<2x32xf32>
    %cst_208 = arith.constant dense<0.000000e+00> : vector<2x32xf32>
    %333 = tpu.matmul %325, %259, %cst_208 {dimension_numbers = #tpu.dot_dimension_numbers<[1], [0], [0], [1], [0, 0, 1, 1], [], []>} : vector<2x32xf32>, vector<32x32xf32>, vector<2x32xf32> -> vector<2x32xf32>
    %cst_209 = arith.constant dense<0.000000e+00> : vector<2x32xf32>
    %334 = tpu.matmul %325, %261, %cst_209 {dimension_numbers = #tpu.dot_dimension_numbers<[1], [0], [0], [1], [0, 0, 1, 1], [], []>} : vector<2x32xf32>, vector<32x32xf32>, vector<2x32xf32> -> vector<2x32xf32>
    %335 = vector.broadcast %262 : vector<1x32xf32> to vector<2x32xf32>
    %336 = arith.addf %334, %335 : vector<2x32xf32>
    %337 = arith.addf %327, %332 : vector<2x32xf32>
    %338 = arith.negf %337 : vector<2x32xf32>
    %339 = math.exp %338 : vector<2x32xf32>
    %cst_210 = arith.constant 1.000000e+00 : f32
    %340 = vector.broadcast %cst_210 : f32 to vector<2x32xf32>
    %341 = arith.addf %340, %339 : vector<2x32xf32>
    %342 = arith.divf %340, %341 : vector<2x32xf32>
    %343 = arith.addf %329, %333 : vector<2x32xf32>
    %344 = arith.negf %343 : vector<2x32xf32>
    %345 = math.exp %344 : vector<2x32xf32>
    %cst_211 = arith.constant 1.000000e+00 : f32
    %346 = vector.broadcast %cst_211 : f32 to vector<2x32xf32>
    %347 = arith.addf %346, %345 : vector<2x32xf32>
    %348 = arith.divf %346, %347 : vector<2x32xf32>
    %349 = arith.mulf %342, %336 : vector<2x32xf32>
    %350 = arith.addf %331, %349 : vector<2x32xf32>
    %351 = math.tanh %350 : vector<2x32xf32>
    %cst_212 = arith.constant 1.000000e+00 : f32
    %352 = vector.broadcast %cst_212 : f32 to vector<2x32xf32>
    %353 = arith.subf %352, %348 : vector<2x32xf32>
    %354 = arith.mulf %353, %351 : vector<2x32xf32>
    %355 = arith.mulf %348, %325 : vector<2x32xf32>
    %356 = arith.addf %354, %355 : vector<2x32xf32>
    %c0_213 = arith.constant 0 : index
    %c4_214 = arith.constant 4 : index
    %c0_215 = arith.constant 0 : index
    %c0_216 = arith.constant 0 : index
    %357 = vector.load %arg3[%c0_213, %c4_214, %c0_215, %c0_216] : memref<3x8x2x32xf32, #tpu.memory_space<vmem>>, vector<1x1x2x32xf32>
    %358 = vector.shape_cast %357 : vector<1x1x2x32xf32> to vector<2x32xf32>
    %c1_217 = arith.constant 1 : index
    %c4_218 = arith.constant 4 : index
    %c0_219 = arith.constant 0 : index
    %c0_220 = arith.constant 0 : index
    %359 = vector.load %arg3[%c1_217, %c4_218, %c0_219, %c0_220] : memref<3x8x2x32xf32, #tpu.memory_space<vmem>>, vector<1x1x2x32xf32>
    %360 = vector.shape_cast %359 : vector<1x1x2x32xf32> to vector<2x32xf32>
    %c2_221 = arith.constant 2 : index
    %c4_222 = arith.constant 4 : index
    %c0_223 = arith.constant 0 : index
    %c0_224 = arith.constant 0 : index
    %361 = vector.load %arg3[%c2_221, %c4_222, %c0_223, %c0_224] : memref<3x8x2x32xf32, #tpu.memory_space<vmem>>, vector<1x1x2x32xf32>
    %362 = vector.shape_cast %361 : vector<1x1x2x32xf32> to vector<2x32xf32>
    %cst_225 = arith.constant dense<0.000000e+00> : vector<2x32xf32>
    %363 = tpu.matmul %356, %257, %cst_225 {dimension_numbers = #tpu.dot_dimension_numbers<[1], [0], [0], [1], [0, 0, 1, 1], [], []>} : vector<2x32xf32>, vector<32x32xf32>, vector<2x32xf32> -> vector<2x32xf32>
    %cst_226 = arith.constant dense<0.000000e+00> : vector<2x32xf32>
    %364 = tpu.matmul %356, %259, %cst_226 {dimension_numbers = #tpu.dot_dimension_numbers<[1], [0], [0], [1], [0, 0, 1, 1], [], []>} : vector<2x32xf32>, vector<32x32xf32>, vector<2x32xf32> -> vector<2x32xf32>
    %cst_227 = arith.constant dense<0.000000e+00> : vector<2x32xf32>
    %365 = tpu.matmul %356, %261, %cst_227 {dimension_numbers = #tpu.dot_dimension_numbers<[1], [0], [0], [1], [0, 0, 1, 1], [], []>} : vector<2x32xf32>, vector<32x32xf32>, vector<2x32xf32> -> vector<2x32xf32>
    %366 = vector.broadcast %262 : vector<1x32xf32> to vector<2x32xf32>
    %367 = arith.addf %365, %366 : vector<2x32xf32>
    %368 = arith.addf %358, %363 : vector<2x32xf32>
    %369 = arith.negf %368 : vector<2x32xf32>
    %370 = math.exp %369 : vector<2x32xf32>
    %cst_228 = arith.constant 1.000000e+00 : f32
    %371 = vector.broadcast %cst_228 : f32 to vector<2x32xf32>
    %372 = arith.addf %371, %370 : vector<2x32xf32>
    %373 = arith.divf %371, %372 : vector<2x32xf32>
    %374 = arith.addf %360, %364 : vector<2x32xf32>
    %375 = arith.negf %374 : vector<2x32xf32>
    %376 = math.exp %375 : vector<2x32xf32>
    %cst_229 = arith.constant 1.000000e+00 : f32
    %377 = vector.broadcast %cst_229 : f32 to vector<2x32xf32>
    %378 = arith.addf %377, %376 : vector<2x32xf32>
    %379 = arith.divf %377, %378 : vector<2x32xf32>
    %380 = arith.mulf %373, %367 : vector<2x32xf32>
    %381 = arith.addf %362, %380 : vector<2x32xf32>
    %382 = math.tanh %381 : vector<2x32xf32>
    %cst_230 = arith.constant 1.000000e+00 : f32
    %383 = vector.broadcast %cst_230 : f32 to vector<2x32xf32>
    %384 = arith.subf %383, %379 : vector<2x32xf32>
    %385 = arith.mulf %384, %382 : vector<2x32xf32>
    %386 = arith.mulf %379, %356 : vector<2x32xf32>
    %387 = arith.addf %385, %386 : vector<2x32xf32>
    %c0_231 = arith.constant 0 : index
    %c3_232 = arith.constant 3 : index
    %c0_233 = arith.constant 0 : index
    %c0_234 = arith.constant 0 : index
    %388 = vector.load %arg3[%c0_231, %c3_232, %c0_233, %c0_234] : memref<3x8x2x32xf32, #tpu.memory_space<vmem>>, vector<1x1x2x32xf32>
    %389 = vector.shape_cast %388 : vector<1x1x2x32xf32> to vector<2x32xf32>
    %c1_235 = arith.constant 1 : index
    %c3_236 = arith.constant 3 : index
    %c0_237 = arith.constant 0 : index
    %c0_238 = arith.constant 0 : index
    %390 = vector.load %arg3[%c1_235, %c3_236, %c0_237, %c0_238] : memref<3x8x2x32xf32, #tpu.memory_space<vmem>>, vector<1x1x2x32xf32>
    %391 = vector.shape_cast %390 : vector<1x1x2x32xf32> to vector<2x32xf32>
    %c2_239 = arith.constant 2 : index
    %c3_240 = arith.constant 3 : index
    %c0_241 = arith.constant 0 : index
    %c0_242 = arith.constant 0 : index
    %392 = vector.load %arg3[%c2_239, %c3_240, %c0_241, %c0_242] : memref<3x8x2x32xf32, #tpu.memory_space<vmem>>, vector<1x1x2x32xf32>
    %393 = vector.shape_cast %392 : vector<1x1x2x32xf32> to vector<2x32xf32>
    %cst_243 = arith.constant dense<0.000000e+00> : vector<2x32xf32>
    %394 = tpu.matmul %387, %257, %cst_243 {dimension_numbers = #tpu.dot_dimension_numbers<[1], [0], [0], [1], [0, 0, 1, 1], [], []>} : vector<2x32xf32>, vector<32x32xf32>, vector<2x32xf32> -> vector<2x32xf32>
    %cst_244 = arith.constant dense<0.000000e+00> : vector<2x32xf32>
    %395 = tpu.matmul %387, %259, %cst_244 {dimension_numbers = #tpu.dot_dimension_numbers<[1], [0], [0], [1], [0, 0, 1, 1], [], []>} : vector<2x32xf32>, vector<32x32xf32>, vector<2x32xf32> -> vector<2x32xf32>
    %cst_245 = arith.constant dense<0.000000e+00> : vector<2x32xf32>
    %396 = tpu.matmul %387, %261, %cst_245 {dimension_numbers = #tpu.dot_dimension_numbers<[1], [0], [0], [1], [0, 0, 1, 1], [], []>} : vector<2x32xf32>, vector<32x32xf32>, vector<2x32xf32> -> vector<2x32xf32>
    %397 = vector.broadcast %262 : vector<1x32xf32> to vector<2x32xf32>
    %398 = arith.addf %396, %397 : vector<2x32xf32>
    %399 = arith.addf %389, %394 : vector<2x32xf32>
    %400 = arith.negf %399 : vector<2x32xf32>
    %401 = math.exp %400 : vector<2x32xf32>
    %cst_246 = arith.constant 1.000000e+00 : f32
    %402 = vector.broadcast %cst_246 : f32 to vector<2x32xf32>
    %403 = arith.addf %402, %401 : vector<2x32xf32>
    %404 = arith.divf %402, %403 : vector<2x32xf32>
    %405 = arith.addf %391, %395 : vector<2x32xf32>
    %406 = arith.negf %405 : vector<2x32xf32>
    %407 = math.exp %406 : vector<2x32xf32>
    %cst_247 = arith.constant 1.000000e+00 : f32
    %408 = vector.broadcast %cst_247 : f32 to vector<2x32xf32>
    %409 = arith.addf %408, %407 : vector<2x32xf32>
    %410 = arith.divf %408, %409 : vector<2x32xf32>
    %411 = arith.mulf %404, %398 : vector<2x32xf32>
    %412 = arith.addf %393, %411 : vector<2x32xf32>
    %413 = math.tanh %412 : vector<2x32xf32>
    %cst_248 = arith.constant 1.000000e+00 : f32
    %414 = vector.broadcast %cst_248 : f32 to vector<2x32xf32>
    %415 = arith.subf %414, %410 : vector<2x32xf32>
    %416 = arith.mulf %415, %413 : vector<2x32xf32>
    %417 = arith.mulf %410, %387 : vector<2x32xf32>
    %418 = arith.addf %416, %417 : vector<2x32xf32>
    %c0_249 = arith.constant 0 : index
    %c2_250 = arith.constant 2 : index
    %c0_251 = arith.constant 0 : index
    %c0_252 = arith.constant 0 : index
    %419 = vector.load %arg3[%c0_249, %c2_250, %c0_251, %c0_252] : memref<3x8x2x32xf32, #tpu.memory_space<vmem>>, vector<1x1x2x32xf32>
    %420 = vector.shape_cast %419 : vector<1x1x2x32xf32> to vector<2x32xf32>
    %c1_253 = arith.constant 1 : index
    %c2_254 = arith.constant 2 : index
    %c0_255 = arith.constant 0 : index
    %c0_256 = arith.constant 0 : index
    %421 = vector.load %arg3[%c1_253, %c2_254, %c0_255, %c0_256] : memref<3x8x2x32xf32, #tpu.memory_space<vmem>>, vector<1x1x2x32xf32>
    %422 = vector.shape_cast %421 : vector<1x1x2x32xf32> to vector<2x32xf32>
    %c2_257 = arith.constant 2 : index
    %c2_258 = arith.constant 2 : index
    %c0_259 = arith.constant 0 : index
    %c0_260 = arith.constant 0 : index
    %423 = vector.load %arg3[%c2_257, %c2_258, %c0_259, %c0_260] : memref<3x8x2x32xf32, #tpu.memory_space<vmem>>, vector<1x1x2x32xf32>
    %424 = vector.shape_cast %423 : vector<1x1x2x32xf32> to vector<2x32xf32>
    %cst_261 = arith.constant dense<0.000000e+00> : vector<2x32xf32>
    %425 = tpu.matmul %418, %257, %cst_261 {dimension_numbers = #tpu.dot_dimension_numbers<[1], [0], [0], [1], [0, 0, 1, 1], [], []>} : vector<2x32xf32>, vector<32x32xf32>, vector<2x32xf32> -> vector<2x32xf32>
    %cst_262 = arith.constant dense<0.000000e+00> : vector<2x32xf32>
    %426 = tpu.matmul %418, %259, %cst_262 {dimension_numbers = #tpu.dot_dimension_numbers<[1], [0], [0], [1], [0, 0, 1, 1], [], []>} : vector<2x32xf32>, vector<32x32xf32>, vector<2x32xf32> -> vector<2x32xf32>
    %cst_263 = arith.constant dense<0.000000e+00> : vector<2x32xf32>
    %427 = tpu.matmul %418, %261, %cst_263 {dimension_numbers = #tpu.dot_dimension_numbers<[1], [0], [0], [1], [0, 0, 1, 1], [], []>} : vector<2x32xf32>, vector<32x32xf32>, vector<2x32xf32> -> vector<2x32xf32>
    %428 = vector.broadcast %262 : vector<1x32xf32> to vector<2x32xf32>
    %429 = arith.addf %427, %428 : vector<2x32xf32>
    %430 = arith.addf %420, %425 : vector<2x32xf32>
    %431 = arith.negf %430 : vector<2x32xf32>
    %432 = math.exp %431 : vector<2x32xf32>
    %cst_264 = arith.constant 1.000000e+00 : f32
    %433 = vector.broadcast %cst_264 : f32 to vector<2x32xf32>
    %434 = arith.addf %433, %432 : vector<2x32xf32>
    %435 = arith.divf %433, %434 : vector<2x32xf32>
    %436 = arith.addf %422, %426 : vector<2x32xf32>
    %437 = arith.negf %436 : vector<2x32xf32>
    %438 = math.exp %437 : vector<2x32xf32>
    %cst_265 = arith.constant 1.000000e+00 : f32
    %439 = vector.broadcast %cst_265 : f32 to vector<2x32xf32>
    %440 = arith.addf %439, %438 : vector<2x32xf32>
    %441 = arith.divf %439, %440 : vector<2x32xf32>
    %442 = arith.mulf %435, %429 : vector<2x32xf32>
    %443 = arith.addf %424, %442 : vector<2x32xf32>
    %444 = math.tanh %443 : vector<2x32xf32>
    %cst_266 = arith.constant 1.000000e+00 : f32
    %445 = vector.broadcast %cst_266 : f32 to vector<2x32xf32>
    %446 = arith.subf %445, %441 : vector<2x32xf32>
    %447 = arith.mulf %446, %444 : vector<2x32xf32>
    %448 = arith.mulf %441, %418 : vector<2x32xf32>
    %449 = arith.addf %447, %448 : vector<2x32xf32>
    %c0_267 = arith.constant 0 : index
    %c1_268 = arith.constant 1 : index
    %c0_269 = arith.constant 0 : index
    %c0_270 = arith.constant 0 : index
    %450 = vector.load %arg3[%c0_267, %c1_268, %c0_269, %c0_270] : memref<3x8x2x32xf32, #tpu.memory_space<vmem>>, vector<1x1x2x32xf32>
    %451 = vector.shape_cast %450 : vector<1x1x2x32xf32> to vector<2x32xf32>
    %c1_271 = arith.constant 1 : index
    %c1_272 = arith.constant 1 : index
    %c0_273 = arith.constant 0 : index
    %c0_274 = arith.constant 0 : index
    %452 = vector.load %arg3[%c1_271, %c1_272, %c0_273, %c0_274] : memref<3x8x2x32xf32, #tpu.memory_space<vmem>>, vector<1x1x2x32xf32>
    %453 = vector.shape_cast %452 : vector<1x1x2x32xf32> to vector<2x32xf32>
    %c2_275 = arith.constant 2 : index
    %c1_276 = arith.constant 1 : index
    %c0_277 = arith.constant 0 : index
    %c0_278 = arith.constant 0 : index
    %454 = vector.load %arg3[%c2_275, %c1_276, %c0_277, %c0_278] : memref<3x8x2x32xf32, #tpu.memory_space<vmem>>, vector<1x1x2x32xf32>
    %455 = vector.shape_cast %454 : vector<1x1x2x32xf32> to vector<2x32xf32>
    %cst_279 = arith.constant dense<0.000000e+00> : vector<2x32xf32>
    %456 = tpu.matmul %449, %257, %cst_279 {dimension_numbers = #tpu.dot_dimension_numbers<[1], [0], [0], [1], [0, 0, 1, 1], [], []>} : vector<2x32xf32>, vector<32x32xf32>, vector<2x32xf32> -> vector<2x32xf32>
    %cst_280 = arith.constant dense<0.000000e+00> : vector<2x32xf32>
    %457 = tpu.matmul %449, %259, %cst_280 {dimension_numbers = #tpu.dot_dimension_numbers<[1], [0], [0], [1], [0, 0, 1, 1], [], []>} : vector<2x32xf32>, vector<32x32xf32>, vector<2x32xf32> -> vector<2x32xf32>
    %cst_281 = arith.constant dense<0.000000e+00> : vector<2x32xf32>
    %458 = tpu.matmul %449, %261, %cst_281 {dimension_numbers = #tpu.dot_dimension_numbers<[1], [0], [0], [1], [0, 0, 1, 1], [], []>} : vector<2x32xf32>, vector<32x32xf32>, vector<2x32xf32> -> vector<2x32xf32>
    %459 = vector.broadcast %262 : vector<1x32xf32> to vector<2x32xf32>
    %460 = arith.addf %458, %459 : vector<2x32xf32>
    %461 = arith.addf %451, %456 : vector<2x32xf32>
    %462 = arith.negf %461 : vector<2x32xf32>
    %463 = math.exp %462 : vector<2x32xf32>
    %cst_282 = arith.constant 1.000000e+00 : f32
    %464 = vector.broadcast %cst_282 : f32 to vector<2x32xf32>
    %465 = arith.addf %464, %463 : vector<2x32xf32>
    %466 = arith.divf %464, %465 : vector<2x32xf32>
    %467 = arith.addf %453, %457 : vector<2x32xf32>
    %468 = arith.negf %467 : vector<2x32xf32>
    %469 = math.exp %468 : vector<2x32xf32>
    %cst_283 = arith.constant 1.000000e+00 : f32
    %470 = vector.broadcast %cst_283 : f32 to vector<2x32xf32>
    %471 = arith.addf %470, %469 : vector<2x32xf32>
    %472 = arith.divf %470, %471 : vector<2x32xf32>
    %473 = arith.mulf %466, %460 : vector<2x32xf32>
    %474 = arith.addf %455, %473 : vector<2x32xf32>
    %475 = math.tanh %474 : vector<2x32xf32>
    %cst_284 = arith.constant 1.000000e+00 : f32
    %476 = vector.broadcast %cst_284 : f32 to vector<2x32xf32>
    %477 = arith.subf %476, %472 : vector<2x32xf32>
    %478 = arith.mulf %477, %475 : vector<2x32xf32>
    %479 = arith.mulf %472, %449 : vector<2x32xf32>
    %480 = arith.addf %478, %479 : vector<2x32xf32>
    %c0_285 = arith.constant 0 : index
    %c0_286 = arith.constant 0 : index
    %c0_287 = arith.constant 0 : index
    %c0_288 = arith.constant 0 : index
    %481 = vector.load %arg3[%c0_285, %c0_286, %c0_287, %c0_288] : memref<3x8x2x32xf32, #tpu.memory_space<vmem>>, vector<1x1x2x32xf32>
    %482 = vector.shape_cast %481 : vector<1x1x2x32xf32> to vector<2x32xf32>
    %c1_289 = arith.constant 1 : index
    %c0_290 = arith.constant 0 : index
    %c0_291 = arith.constant 0 : index
    %c0_292 = arith.constant 0 : index
    %483 = vector.load %arg3[%c1_289, %c0_290, %c0_291, %c0_292] : memref<3x8x2x32xf32, #tpu.memory_space<vmem>>, vector<1x1x2x32xf32>
    %484 = vector.shape_cast %483 : vector<1x1x2x32xf32> to vector<2x32xf32>
    %c2_293 = arith.constant 2 : index
    %c0_294 = arith.constant 0 : index
    %c0_295 = arith.constant 0 : index
    %c0_296 = arith.constant 0 : index
    %485 = vector.load %arg3[%c2_293, %c0_294, %c0_295, %c0_296] : memref<3x8x2x32xf32, #tpu.memory_space<vmem>>, vector<1x1x2x32xf32>
    %486 = vector.shape_cast %485 : vector<1x1x2x32xf32> to vector<2x32xf32>
    %cst_297 = arith.constant dense<0.000000e+00> : vector<2x32xf32>
    %487 = tpu.matmul %480, %257, %cst_297 {dimension_numbers = #tpu.dot_dimension_numbers<[1], [0], [0], [1], [0, 0, 1, 1], [], []>} : vector<2x32xf32>, vector<32x32xf32>, vector<2x32xf32> -> vector<2x32xf32>
    %cst_298 = arith.constant dense<0.000000e+00> : vector<2x32xf32>
    %488 = tpu.matmul %480, %259, %cst_298 {dimension_numbers = #tpu.dot_dimension_numbers<[1], [0], [0], [1], [0, 0, 1, 1], [], []>} : vector<2x32xf32>, vector<32x32xf32>, vector<2x32xf32> -> vector<2x32xf32>
    %cst_299 = arith.constant dense<0.000000e+00> : vector<2x32xf32>
    %489 = tpu.matmul %480, %261, %cst_299 {dimension_numbers = #tpu.dot_dimension_numbers<[1], [0], [0], [1], [0, 0, 1, 1], [], []>} : vector<2x32xf32>, vector<32x32xf32>, vector<2x32xf32> -> vector<2x32xf32>
    %490 = vector.broadcast %262 : vector<1x32xf32> to vector<2x32xf32>
    %491 = arith.addf %489, %490 : vector<2x32xf32>
    %492 = arith.addf %482, %487 : vector<2x32xf32>
    %493 = arith.negf %492 : vector<2x32xf32>
    %494 = math.exp %493 : vector<2x32xf32>
    %cst_300 = arith.constant 1.000000e+00 : f32
    %495 = vector.broadcast %cst_300 : f32 to vector<2x32xf32>
    %496 = arith.addf %495, %494 : vector<2x32xf32>
    %497 = arith.divf %495, %496 : vector<2x32xf32>
    %498 = arith.addf %484, %488 : vector<2x32xf32>
    %499 = arith.negf %498 : vector<2x32xf32>
    %500 = math.exp %499 : vector<2x32xf32>
    %cst_301 = arith.constant 1.000000e+00 : f32
    %501 = vector.broadcast %cst_301 : f32 to vector<2x32xf32>
    %502 = arith.addf %501, %500 : vector<2x32xf32>
    %503 = arith.divf %501, %502 : vector<2x32xf32>
    %504 = arith.mulf %497, %491 : vector<2x32xf32>
    %505 = arith.addf %486, %504 : vector<2x32xf32>
    %506 = math.tanh %505 : vector<2x32xf32>
    %cst_302 = arith.constant 1.000000e+00 : f32
    %507 = vector.broadcast %cst_302 : f32 to vector<2x32xf32>
    %508 = arith.subf %507, %503 : vector<2x32xf32>
    %509 = arith.mulf %508, %506 : vector<2x32xf32>
    %510 = arith.mulf %503, %480 : vector<2x32xf32>
    %511 = arith.addf %509, %510 : vector<2x32xf32>
    %c0_303 = arith.constant 0 : index
    %c0_304 = arith.constant 0 : index
    %512 = vector.load %arg6[%c0_303, %c0_304] : memref<32x4xf32, #tpu.memory_space<vmem>>, vector<32x4xf32>
    %cst_305 = arith.constant dense<0.000000e+00> : vector<2x4xf32>
    %513 = tpu.matmul %255, %512, %cst_305 {dimension_numbers = #tpu.dot_dimension_numbers<[1], [0], [0], [1], [0, 0, 1, 1], [], []>} : vector<2x32xf32>, vector<32x4xf32>, vector<2x4xf32> -> vector<2x4xf32>
    %c0_306 = arith.constant 0 : index
    %c0_307 = arith.constant 0 : index
    %514 = vector.load %arg7[%c0_306, %c0_307] : memref<32x4xf32, #tpu.memory_space<vmem>>, vector<32x4xf32>
    %cst_308 = arith.constant dense<0.000000e+00> : vector<2x4xf32>
    %515 = tpu.matmul %511, %514, %cst_308 {dimension_numbers = #tpu.dot_dimension_numbers<[1], [0], [0], [1], [0, 0, 1, 1], [], []>} : vector<2x32xf32>, vector<32x4xf32>, vector<2x4xf32> -> vector<2x4xf32>
    %516 = arith.addf %513, %515 : vector<2x4xf32>
    %c0_309 = arith.constant 0 : index
    %c0_310 = arith.constant 0 : index
    %517 = vector.load %arg8[%c0_309, %c0_310] : memref<1x4xf32, #tpu.memory_space<vmem>>, vector<1x4xf32>
    %518 = vector.broadcast %517 : vector<1x4xf32> to vector<2x4xf32>
    %519 = arith.addf %516, %518 : vector<2x4xf32>
    %c0_311 = arith.constant 0 : index
    %c0_312 = arith.constant 0 : index
    %520 = vector.load %arg9[%c0_311, %c0_312] : memref<2x4xf32, #tpu.memory_space<vmem>>, vector<2x4xf32>
    tpu.vector_store %arg9[%c0_311, %c0_312], %519 {strides = array<i32>} : memref<2x4xf32, #tpu.memory_space<vmem>>, vector<2x4xf32>,
    return
  }
}

</mosaic_0001>

<llo_original>
// kernel: bigru_attention_forward.1
$region0: #{bigru_attention_forward.1}
  #allocation0 [shape = 'u32[]', space=smem, size = 0x4, offset = 0x4, fixed_abs, tag = 'smem constant byte address 0x4 - core index']
  #allocation1 [shape = 'u32[72,128]{1,0:T(1,128)}', space=vmem, size = 0x9000, scoped, tag = 'internal scratch']
  %s0 = inlined_call_operand.vmem [shape: f32[3,8,2,32], index: 0, kind: input, shape index: {}]
  %s1 = inlined_call_operand.vmem [shape: f32[3,32,32], index: 1, kind: input, shape index: {}]
  %s2 = inlined_call_operand.vmem [shape: f32[1,32], index: 2, kind: input, shape index: {}]
  %s3 = inlined_call_operand.vmem [shape: f32[3,8,2,32], index: 3, kind: input, shape index: {}]
  %s4 = inlined_call_operand.vmem [shape: f32[3,32,32], index: 4, kind: input, shape index: {}]
  %s5 = inlined_call_operand.vmem [shape: f32[1,32], index: 5, kind: input, shape index: {}]
  %s6 = inlined_call_operand.vmem [shape: f32[32,4], index: 6, kind: input, shape index: {}]
  %s7 = inlined_call_operand.vmem [shape: f32[32,4], index: 7, kind: input, shape index: {}]
  %s8 = inlined_call_operand.vmem [shape: f32[1,4], index: 8, kind: input, shape index: {}]
  %s9 = inlined_call_operand.hbm [shape: f32[2,4], index: 9, kind: output, shape index: {}]
  %s10 = sld [smem:[#allocation0]]
  $region46: #{bigru_attention_forward.1} parent=0
    _
  %s12 = ssub.s32 1, %s10
  %s13 = scalar_select 0, %s12, %s10
  $region1: #{bigru_attention_forward.1} parent=0
    #allocation2 [shape = 'u8[1024]{0}', space=vmem, size = 0x400, scoped, tag = 'output window, operand 0, single buffered']
    #allocation3 [shape = 's32[1]{0}', space=sflag, size = 0x4, scoped, tag = 'scoped memory for bigru_attention_forward.1']
    %14 = vsyncpa [#allocation3], 0
    // Predicated region
    $region2: #{bigru_attention_forward.1} parent=1 // pred_check
      _
    $region3: #{bigru_attention_forward.1} parent=1 // pred_check_branch
      %16 = sbr.rel (0) target = $region5
    $region4: #{bigru_attention_forward.1} parent=1 // pred_region
      _
    $region5: #{bigru_attention_forward.1} parent=1 // pred_fallthru
      _
    // Predicated region
    $region6: #{bigru_attention_forward.1} parent=1 // pred_check
      _
    $region7: #{bigru_attention_forward.1} parent=1 // pred_check_branch
      %18 = sbr.rel (0) target = $region9
    $region8: #{bigru_attention_forward.1} parent=1 // pred_region
      _
    $region9: #{bigru_attention_forward.1} parent=1 // pred_fallthru
      _
    // Predicated region
    $region10: #{bigru_attention_forward.1} parent=1 // pred_check
      _
    $region11: #{bigru_attention_forward.1} parent=1 // pred_check_branch
      %20 = sbr.rel (0) target = $region13
    $region12: #{bigru_attention_forward.1} parent=1 // pred_region
      _
    $region13: #{bigru_attention_forward.1} parent=1 // pred_fallthru
      _
    // Predicated region
    $region14: #{bigru_attention_forward.1} parent=1 // pred_check
      _
    $region15: #{bigru_attention_forward.1} parent=1 // pred_check_branch
      %22 = sbr.rel (0) target = $region17
    $region16: #{bigru_attention_forward.1} parent=1 // pred_region
      _
    $region17: #{bigru_attention_forward.1} parent=1 // pred_fallthru
      _
    // Predicated region
    $region18: #{bigru_attention_forward.1} parent=1 // pred_check
      _
    $region19: #{bigru_attention_forward.1} parent=1 // pred_check_branch
      %24 = sbr.rel (0) target = $region21
    $region20: #{bigru_attention_forward.1} parent=1 // pred_region
      _
    $region21: #{bigru_attention_forward.1} parent=1 // pred_fallthru
      _
    // Predicated region
    $region22: #{bigru_attention_forward.1} parent=1 // pred_check
      _
    $region23: #{bigru_attention_forward.1} parent=1 // pred_check_branch
      %26 = sbr.rel (0) target = $region25
    $region24: #{bigru_attention_forward.1} parent=1 // pred_region
      _
    $region25: #{bigru_attention_forward.1} parent=1 // pred_fallthru
      _
    // Predicated region
    $region26: #{bigru_attention_forward.1} parent=1 // pred_check
      _
    $region27: #{bigru_attention_forward.1} parent=1 // pred_check_branch
      %28 = sbr.rel (0) target = $region29
    $region28: #{bigru_attention_forward.1} parent=1 // pred_region
      _
    $region29: #{bigru_attention_forward.1} parent=1 // pred_fallthru
      _
    // Predicated region
    $region30: #{bigru_attention_forward.1} parent=1 // pred_check
      _
    $region31: #{bigru_attention_forward.1} parent=1 // pred_check_branch
      %30 = sbr.rel (0) target = $region33
    $region32: #{bigru_attention_forward.1} parent=1 // pred_region
      _
    $region33: #{bigru_attention_forward.1} parent=1 // pred_fallthru
      _
    // Predicated region
    $region34: #{bigru_attention_forward.1} parent=1 // pred_check
      _
    $region35: #{bigru_attention_forward.1} parent=1 // pred_check_branch
      %32 = sbr.rel (0) target = $region37
    $region36: #{bigru_attention_forward.1} parent=1 // pred_region
      _
    $region37: #{bigru_attention_forward.1} parent=1 // pred_fallthru
      _
    %v33 = vld [vmem:[%s1] sm:$0xff]
    %v34 = vld [vmem:[%s1 + $0x8] sm:$0xff]
    %v35 = vld [vmem:[%s1 + $0x10] sm:$0xff]
    %v36 = vld [vmem:[%s1 + $0x18] sm:$0xff]
    %s37 = scalar_lea.vmem %s1, 32
    %v38 = vld [vmem:[%s37] sm:$0xff]
    %v39 = vld [vmem:[%s37 + $0x8] sm:$0xff]
    %v40 = vld [vmem:[%s37 + $0x10] sm:$0xff]
    %v41 = vld [vmem:[%s37 + $0x18] sm:$0xff]
    %s42 = scalar_lea.vmem %s1, 64
    %v43 = vld [vmem:[%s42] sm:$0xff]
    %v44 = vld [vmem:[%s42 + $0x8] sm:$0xff]
    %v45 = vld [vmem:[%s42 + $0x10] sm:$0xff]
    %v46 = vld [vmem:[%s42 + $0x18] sm:$0xff]
    %v47 = vld [vmem:[%s2] sm:$0x1]
    %v48 = vld [vmem:[%s0] sm:$0x3]
    %s49 = scalar_lea.vmem %s0, 16
    %v50 = vld [vmem:[%s49] sm:$0x3]
    %s51 = scalar_lea.vmem %s0, 32
    %v52 = vld [vmem:[%s51] sm:$0x3]
    %vm53 = vcmask 261120
    %v55 = vsel %vm53, 0.0, 0
    %57 = vmatpush.msra.mxu0 0.0
    %58 = vmatpush.msra.mxu0 0.0
    %59 = vmatpush.msra.mxu0 0.0
    %60 = vmatpush.msra.mxu0 0.0
    %61 = vmatpush.msra.mxu0 0.0
    %62 = vmatpush.msra.mxu0 0.0
    %63 = vmatpush.msra.mxu0 0.0
    %64 = vmatpush.msra.mxu0 0.0
    %65 = vmatpush.msra.mxu0 0.0
    %66 = vmatpush.msra.mxu0 0.0
    %67 = vmatpush.msra.mxu0 0.0
    %68 = vmatpush.msra.mxu0 0.0
    %69 = vmatpush.msra.mxu0 %v36
    %70 = vmatpush.msra.mxu0 %v35
    %71 = vmatpush.msra.mxu0 %v34
    %72 = vmatpush.msra.mxu0 %v33
    %73 = vmatmul.f32.gmra.mxu0 %v55
    %v74 = vpop.f32.mrf.mxu0
    %v75 = vadd.f32 0.0, %v74
    %76 = vdwg.mxu0
    %77 = vmatpush.msra.mxu0 0.0
    %78 = vmatpush.msra.mxu0 0.0
    %79 = vmatpush.msra.mxu0 0.0
    %80 = vmatpush.msra.mxu0 0.0
    %81 = vmatpush.msra.mxu0 0.0
    %82 = vmatpush.msra.mxu0 0.0
    %83 = vmatpush.msra.mxu0 0.0
    %84 = vmatpush.msra.mxu0 0.0
    %85 = vmatpush.msra.mxu0 0.0
    %86 = vmatpush.msra.mxu0 0.0
    %87 = vmatpush.msra.mxu0 0.0
    %88 = vmatpush.msra.mxu0 0.0
    %89 = vmatpush.msra.mxu0 %v41
    %90 = vmatpush.msra.mxu0 %v40
    %91 = vmatpush.msra.mxu0 %v39
    %92 = vmatpush.msra.mxu0 %v38
    %93 = vmatmul.f32.gmra.mxu0 %v55
    %v94 = vpop.f32.mrf.mxu0
    %v95 = vadd.f32 0.0, %v94
    %96 = vdwg.mxu0
    %v98 = vperm.slane %v47, 0
    %100 = vmatpush.msra.mxu0 0.0
    %101 = vmatpush.msra.mxu0 0.0
    %102 = vmatpush.msra.mxu0 0.0
    %103 = vmatpush.msra.mxu0 0.0
    %104 = vmatpush.msra.mxu0 0.0
    %105 = vmatpush.msra.mxu0 0.0
    %106 = vmatpush.msra.mxu0 0.0
    %107 = vmatpush.msra.mxu0 0.0
    %108 = vmatpush.msra.mxu0 0.0
    %109 = vmatpush.msra.mxu0 0.0
    %110 = vmatpush.msra.mxu0 0.0
    %111 = vmatpush.msra.mxu0 0.0
    %112 = vmatpush.msra.mxu0 %v46
    %113 = vmatpush.msra.mxu0 %v45
    %114 = vmatpush.msra.mxu0 %v44
    %115 = vmatpush.msra.mxu0 %v43
    %116 = vmatmul.f32.gmra.mxu0 %v55
    %v117 = vpop.f32.mrf.mxu0
    %v118 = vadd.f32 %v98, %v117
    %119 = vdwg.mxu0
    %v120 = vadd.f32 %v48, %v75
    %v121 = vxor.u32 %v120, 2147483648
    %v122 = vmul.f32 %v121, 1.442695
    %v123 = vpow.pop %v122
    %v124 = vadd.f32 %v123, 1.0
    %v125 = vrcp.pop %v124
    %v126 = vmul.f32 %v124, %v125
    %v127 = vsub.f32 1.0, %v126
    %v128 = vmul.f32 %v125, %v127
    %v129 = vadd.f32 %v125, %v128
    %vm130 = vweird.f32 %v124
    %vm131 = vweird.f32 %v125
    %vm132 = vmor %vm130, %vm131
    %v133 = vsel %vm132, %v125, %v129
    %v134 = vand.u32 2147483647, %v124
    %vm135 = vcmp.eq.f32.partialorder %v134, 8.507059e+37
    %v136 = vand.u32 %v124, 2147483648
    %v137 = vor.u32 1.1754944e-38, %v136
    %v138 = vsel %vm135, %v137, %v133
    %v139 = vmul.f32 1.0, %v138
    %v140 = vadd.f32 %v50, %v95
    %v141 = vxor.u32 %v140, 2147483648
    %v142 = vmul.f32 %v141, 1.442695
    %v143 = vpow.pop %v142
    %v144 = vadd.f32 %v143, 1.0
    %v145 = vrcp.pop %v144
    %v146 = vmul.f32 %v144, %v145
    %v147 = vsub.f32 1.0, %v146
    %v148 = vmul.f32 %v145, %v147
    %v149 = vadd.f32 %v145, %v148
    %vm150 = vweird.f32 %v144
    %vm151 = vweird.f32 %v145
    %vm152 = vmor %vm150, %vm151
    %v153 = vsel %vm152, %v145, %v149
    %v154 = vand.u32 2147483647, %v144
    %vm155 = vcmp.eq.f32.partialorder %v154, 8.507059e+37
    %v156 = vand.u32 %v144, 2147483648
    %v157 = vor.u32 1.1754944e-38, %v156
    %v158 = vsel %vm155, %v157, %v153
    %v159 = vmul.f32 1.0, %v158
    %v160 = vmul.f32 %v139, %v118
    %v161 = vadd.f32 %v52, %v160
    %v162 = vtanh.pop %v161
    %v163 = vsub.f32 1.0, %v159
    %v164 = vmul.f32 %v163, %v162
    %v165 = vmul.f32 %v159, 0.0
    %v166 = vadd.f32 %v164, %v165
    %s167 = scalar_lea.vmem %s0, 2
    %v168 = vld [vmem:[%s167] sm:$0x3]
    %s169 = scalar_lea.vmem %s0, 18
    %v170 = vld [vmem:[%s169] sm:$0x3]
    %s171 = scalar_lea.vmem %s0, 34
    %v172 = vld [vmem:[%s171] sm:$0x3]
    %v174 = vsel %vm53, %v166, 0
    %176 = vmatpush.msra.mxu0 0.0
    %177 = vmatpush.msra.mxu0 0.0
    %178 = vmatpush.msra.mxu0 0.0
    %179 = vmatpush.msra.mxu0 0.0
    %180 = vmatpush.msra.mxu0 0.0
    %181 = vmatpush.msra.mxu0 0.0
    %182 = vmatpush.msra.mxu0 0.0
    %183 = vmatpush.msra.mxu0 0.0
    %184 = vmatpush.msra.mxu0 0.0
    %185 = vmatpush.msra.mxu0 0.0
    %186 = vmatpush.msra.mxu0 0.0
    %187 = vmatpush.msra.mxu0 0.0
    %188 = vmatpush.msra.mxu0 %v36
    %189 = vmatpush.msra.mxu0 %v35
    %190 = vmatpush.msra.mxu0 %v34
    %191 = vmatpush.msra.mxu0 %v33
    %192 = vmatmul.f32.gmra.mxu0 %v174
    %v193 = vpop.f32.mrf.mxu0
    %v194 = vadd.f32 0.0, %v193
    %195 = vdwg.mxu0
    %196 = vmatpush.msra.mxu0 0.0
    %197 = vmatpush.msra.mxu0 0.0
    %198 = vmatpush.msra.mxu0 0.0
    %199 = vmatpush.msra.mxu0 0.0
    %200 = vmatpush.msra.mxu0 0.0
    %201 = vmatpush.msra.mxu0 0.0
    %202 = vmatpush.msra.mxu0 0.0
    %203 = vmatpush.msra.mxu0 0.0
    %204 = vmatpush.msra.mxu0 0.0
    %205 = vmatpush.msra.mxu0 0.0
    %206 = vmatpush.msra.mxu0 0.0
    %207 = vmatpush.msra.mxu0 0.0
    %208 = vmatpush.msra.mxu0 %v41
    %209 = vmatpush.msra.mxu0 %v40
    %210 = vmatpush.msra.mxu0 %v39
    %211 = vmatpush.msra.mxu0 %v38
    %212 = vmatmul.f32.gmra.mxu0 %v174
    %v213 = vpop.f32.mrf.mxu0
    %v214 = vadd.f32 0.0, %v213
    %215 = vdwg.mxu0
    %216 = vmatpush.msra.mxu0 0.0
    %217 = vmatpush.msra.mxu0 0.0
    %218 = vmatpush.msra.mxu0 0.0
    %219 = vmatpush.msra.mxu0 0.0
    %220 = vmatpush.msra.mxu0 0.0
    %221 = vmatpush.msra.mxu0 0.0
    %222 = vmatpush.msra.mxu0 0.0
    %223 = vmatpush.msra.mxu0 0.0
    %224 = vmatpush.msra.mxu0 0.0
    %225 = vmatpush.msra.mxu0 0.0
    %226 = vmatpush.msra.mxu0 0.0
    %227 = vmatpush.msra.mxu0 0.0
    %228 = vmatpush.msra.mxu0 %v46
    %229 = vmatpush.msra.mxu0 %v45
    %230 = vmatpush.msra.mxu0 %v44
    %231 = vmatpush.msra.mxu0 %v43
    %232 = vmatmul.f32.gmra.mxu0 %v174
    %v233 = vpop.f32.mrf.mxu0
    %v234 = vadd.f32 %v98, %v233
    %235 = vdwg.mxu0
    %v236 = vadd.f32 %v168, %v194
    %v237 = vxor.u32 %v236, 2147483648
    %v238 = vmul.f32 %v237, 1.442695
    %v239 = vpow.pop %v238
    %v240 = vadd.f32 %v239, 1.0
    %v241 = vrcp.pop %v240
    %v242 = vmul.f32 %v240, %v241
    %v243 = vsub.f32 1.0, %v242
    %v244 = vmul.f32 %v241, %v243
    %v245 = vadd.f32 %v241, %v244
    %vm246 = vweird.f32 %v240
    %vm247 = vweird.f32 %v241
    %vm248 = vmor %vm246, %vm247
    %v249 = vsel %vm248, %v241, %v245
    %v250 = vand.u32 2147483647, %v240
    %vm251 = vcmp.eq.f32.partialorder %v250, 8.507059e+37
    %v252 = vand.u32 %v240, 2147483648
    %v253 = vor.u32 1.1754944e-38, %v252
    %v254 = vsel %vm251, %v253, %v249
    %v255 = vmul.f32 1.0, %v254
    %v256 = vadd.f32 %v170, %v214
    %v257 = vxor.u32 %v256, 2147483648
    %v258 = vmul.f32 %v257, 1.442695
    %v259 = vpow.pop %v258
    %v260 = vadd.f32 %v259, 1.0
    %v261 = vrcp.pop %v260
    %v262 = vmul.f32 %v260, %v261
    %v263 = vsub.f32 1.0, %v262
    %v264 = vmul.f32 %v261, %v263
    %v265 = vadd.f32 %v261, %v264
    %vm266 = vweird.f32 %v260
    %vm267 = vweird.f32 %v261
    %vm268 = vmor %vm266, %vm267
    %v269 = vsel %vm268, %v261, %v265
    %v270 = vand.u32 2147483647, %v260
    %vm271 = vcmp.eq.f32.partialorder %v270, 8.507059e+37
    %v272 = vand.u32 %v260, 2147483648
    %v273 = vor.u32 1.1754944e-38, %v272
    %v274 = vsel %vm271, %v273, %v269
    %v275 = vmul.f32 1.0, %v274
    %v276 = vmul.f32 %v255, %v234
    %v277 = vadd.f32 %v172, %v276
    %v278 = vtanh.pop %v277
    %v279 = vsub.f32 1.0, %v275
    %v280 = vmul.f32 %v279, %v278
    %v281 = vmul.f32 %v275, %v166
    %v282 = vadd.f32 %v280, %v281
    %s283 = scalar_lea.vmem %s0, 4
    %v284 = vld [vmem:[%s283] sm:$0x3]
    %s285 = scalar_lea.vmem %s0, 20
    %v286 = vld [vmem:[%s285] sm:$0x3]
    %s287 = scalar_lea.vmem %s0, 36
    %v288 = vld [vmem:[%s287] sm:$0x3]
    %v290 = vsel %vm53, %v282, 0
    %292 = vmatpush.msra.mxu0 0.0
    %293 = vmatpush.msra.mxu0 0.0
    %294 = vmatpush.msra.mxu0 0.0
    %295 = vmatpush.msra.mxu0 0.0
    %296 = vmatpush.msra.mxu0 0.0
    %297 = vmatpush.msra.mxu0 0.0
    %298 = vmatpush.msra.mxu0 0.0
    %299 = vmatpush.msra.mxu0 0.0
    %300 = vmatpush.msra.mxu0 0.0
    %301 = vmatpush.msra.mxu0 0.0
    %302 = vmatpush.msra.mxu0 0.0
    %303 = vmatpush.msra.mxu0 0.0
    %304 = vmatpush.msra.mxu0 %v36
    %305 = vmatpush.msra.mxu0 %v35
    %306 = vmatpush.msra.mxu0 %v34
    %307 = vmatpush.msra.mxu0 %v33
    %308 = vmatmul.f32.gmra.mxu0 %v290
    %v309 = vpop.f32.mrf.mxu0
    %v310 = vadd.f32 0.0, %v309
    %311 = vdwg.mxu0
    %312 = vmatpush.msra.mxu0 0.0
    %313 = vmatpush.msra.mxu0 0.0
    %314 = vmatpush.msra.mxu0 0.0
    %315 = vmatpush.msra.mxu0 0.0
    %316 = vmatpush.msra.mxu0 0.0
    %317 = vmatpush.msra.mxu0 0.0
    %318 = vmatpush.msra.mxu0 0.0
    %319 = vmatpush.msra.mxu0 0.0
    %320 = vmatpush.msra.mxu0 0.0
    %321 = vmatpush.msra.mxu0 0.0
    %322 = vmatpush.msra.mxu0 0.0
    %323 = vmatpush.msra.mxu0 0.0
    %324 = vmatpush.msra.mxu0 %v41
    %325 = vmatpush.msra.mxu0 %v40
    %326 = vmatpush.msra.mxu0 %v39
    %327 = vmatpush.msra.mxu0 %v38
    %328 = vmatmul.f32.gmra.mxu0 %v290
    %v329 = vpop.f32.mrf.mxu0
    %v330 = vadd.f32 0.0, %v329
    %331 = vdwg.mxu0
    %332 = vmatpush.msra.mxu0 0.0
    %333 = vmatpush.msra.mxu0 0.0
    %334 = vmatpush.msra.mxu0 0.0
    %335 = vmatpush.msra.mxu0 0.0
    %336 = vmatpush.msra.mxu0 0.0
    %337 = vmatpush.msra.mxu0 0.0
    %338 = vmatpush.msra.mxu0 0.0
    %339 = vmatpush.msra.mxu0 0.0
    %340 = vmatpush.msra.mxu0 0.0
    %341 = vmatpush.msra.mxu0 0.0
    %342 = vmatpush.msra.mxu0 0.0
    %343 = vmatpush.msra.mxu0 0.0
    %344 = vmatpush.msra.mxu0 %v46
    %345 = vmatpush.msra.mxu0 %v45
    %346 = vmatpush.msra.mxu0 %v44
    %347 = vmatpush.msra.mxu0 %v43
    %348 = vmatmul.f32.gmra.mxu0 %v290
    %v349 = vpop.f32.mrf.mxu0
    %v350 = vadd.f32 %v98, %v349
    %351 = vdwg.mxu0
    %v352 = vadd.f32 %v284, %v310
    %v353 = vxor.u32 %v352, 2147483648
    %v354 = vmul.f32 %v353, 1.442695
    %v355 = vpow.pop %v354
    %v356 = vadd.f32 %v355, 1.0
    %v357 = vrcp.pop %v356
    %v358 = vmul.f32 %v356, %v357
    %v359 = vsub.f32 1.0, %v358
    %v360 = vmul.f32 %v357, %v359
    %v361 = vadd.f32 %v357, %v360
    %vm362 = vweird.f32 %v356
    %vm363 = vweird.f32 %v357
    %vm364 = vmor %vm362, %vm363
    %v365 = vsel %vm364, %v357, %v361
    %v366 = vand.u32 2147483647, %v356
    %vm367 = vcmp.eq.f32.partialorder %v366, 8.507059e+37
    %v368 = vand.u32 %v356, 2147483648
    %v369 = vor.u32 1.1754944e-38, %v368
    %v370 = vsel %vm367, %v369, %v365
    %v371 = vmul.f32 1.0, %v370
    %v372 = vadd.f32 %v286, %v330
    %v373 = vxor.u32 %v372, 2147483648
    %v374 = vmul.f32 %v373, 1.442695
    %v375 = vpow.pop %v374
    %v376 = vadd.f32 %v375, 1.0
    %v377 = vrcp.pop %v376
    %v378 = vmul.f32 %v376, %v377
    %v379 = vsub.f32 1.0, %v378
    %v380 = vmul.f32 %v377, %v379
    %v381 = vadd.f32 %v377, %v380
    %vm382 = vweird.f32 %v376
    %vm383 = vweird.f32 %v377
    %vm384 = vmor %vm382, %vm383
    %v385 = vsel %vm384, %v377, %v381
    %v386 = vand.u32 2147483647, %v376
    %vm387 = vcmp.eq.f32.partialorder %v386, 8.507059e+37
    %v388 = vand.u32 %v376, 2147483648
    %v389 = vor.u32 1.1754944e-38, %v388
    %v390 = vsel %vm387, %v389, %v385
    %v391 = vmul.f32 1.0, %v390
    %v392 = vmul.f32 %v371, %v350
    %v393 = vadd.f32 %v288, %v392
    %v394 = vtanh.pop %v393
    %v395 = vsub.f32 1.0, %v391
    %v396 = vmul.f32 %v395, %v394
    %v397 = vmul.f32 %v391, %v282
    %v398 = vadd.f32 %v396, %v397
    %s399 = scalar_lea.vmem %s0, 6
    %v400 = vld [vmem:[%s399] sm:$0x3]
    %s401 = scalar_lea.vmem %s0, 22
    %v402 = vld [vmem:[%s401] sm:$0x3]
    %s403 = scalar_lea.vmem %s0, 38
    %v404 = vld [vmem:[%s403] sm:$0x3]
    %v406 = vsel %vm53, %v398, 0
    %408 = vmatpush.msra.mxu0 0.0
    %409 = vmatpush.msra.mxu0 0.0
    %410 = vmatpush.msra.mxu0 0.0
    %411 = vmatpush.msra.mxu0 0.0
    %412 = vmatpush.msra.mxu0 0.0
    %413 = vmatpush.msra.mxu0 0.0
    %414 = vmatpush.msra.mxu0 0.0
    %415 = vmatpush.msra.mxu0 0.0
    %416 = vmatpush.msra.mxu0 0.0
    %417 = vmatpush.msra.mxu0 0.0
    %418 = vmatpush.msra.mxu0 0.0
    %419 = vmatpush.msra.mxu0 0.0
    %420 = vmatpush.msra.mxu0 %v36
    %421 = vmatpush.msra.mxu0 %v35
    %422 = vmatpush.msra.mxu0 %v34
    %423 = vmatpush.msra.mxu0 %v33
    %424 = vmatmul.f32.gmra.mxu0 %v406
    %v425 = vpop.f32.mrf.mxu0
    %v426 = vadd.f32 0.0, %v425
    %427 = vdwg.mxu0
    %428 = vmatpush.msra.mxu0 0.0
    %429 = vmatpush.msra.mxu0 0.0
    %430 = vmatpush.msra.mxu0 0.0
    %431 = vmatpush.msra.mxu0 0.0
    %432 = vmatpush.msra.mxu0 0.0
    %433 = vmatpush.msra.mxu0 0.0
    %434 = vmatpush.msra.mxu0 0.0
    %435 = vmatpush.msra.mxu0 0.0
    %436 = vmatpush.msra.mxu0 0.0
    %437 = vmatpush.msra.mxu0 0.0
    %438 = vmatpush.msra.mxu0 0.0
    %439 = vmatpush.msra.mxu0 0.0
    %440 = vmatpush.msra.mxu0 %v41
    %441 = vmatpush.msra.mxu0 %v40
    %442 = vmatpush.msra.mxu0 %v39
    %443 = vmatpush.msra.mxu0 %v38
    %444 = vmatmul.f32.gmra.mxu0 %v406
    %v445 = vpop.f32.mrf.mxu0
    %v446 = vadd.f32 0.0, %v445
    %447 = vdwg.mxu0
    %448 = vmatpush.msra.mxu0 0.0
    %449 = vmatpush.msra.mxu0 0.0
    %450 = vmatpush.msra.mxu0 0.0
    %451 = vmatpush.msra.mxu0 0.0
    %452 = vmatpush.msra.mxu0 0.0
    %453 = vmatpush.msra.mxu0 0.0
    %454 = vmatpush.msra.mxu0 0.0
    %455 = vmatpush.msra.mxu0 0.0
    %456 = vmatpush.msra.mxu0 0.0
    %457 = vmatpush.msra.mxu0 0.0
    %458 = vmatpush.msra.mxu0 0.0
    %459 = vmatpush.msra.mxu0 0.0
    %460 = vmatpush.msra.mxu0 %v46
    %461 = vmatpush.msra.mxu0 %v45
    %462 = vmatpush.msra.mxu0 %v44
    %463 = vmatpush.msra.mxu0 %v43
    %464 = vmatmul.f32.gmra.mxu0 %v406
    %v465 = vpop.f32.mrf.mxu0
    %v466 = vadd.f32 %v98, %v465
    %467 = vdwg.mxu0
    %v468 = vadd.f32 %v400, %v426
    %v469 = vxor.u32 %v468, 2147483648
    %v470 = vmul.f32 %v469, 1.442695
    %v471 = vpow.pop %v470
    %v472 = vadd.f32 %v471, 1.0
    %v473 = vrcp.pop %v472
    %v474 = vmul.f32 %v472, %v473
    %v475 = vsub.f32 1.0, %v474
    %v476 = vmul.f32 %v473, %v475
    %v477 = vadd.f32 %v473, %v476
    %vm478 = vweird.f32 %v472
    %vm479 = vweird.f32 %v473
    %vm480 = vmor %vm478, %vm479
    %v481 = vsel %vm480, %v473, %v477
    %v482 = vand.u32 2147483647, %v472
    %vm483 = vcmp.eq.f32.partialorder %v482, 8.507059e+37
    %v484 = vand.u32 %v472, 2147483648
    %v485 = vor.u32 1.1754944e-38, %v484
    %v486 = vsel %vm483, %v485, %v481
    %v487 = vmul.f32 1.0, %v486
    %v488 = vadd.f32 %v402, %v446
    %v489 = vxor.u32 %v488, 2147483648
    %v490 = vmul.f32 %v489, 1.442695
    %v491 = vpow.pop %v490
    %v492 = vadd.f32 %v491, 1.0
    %v493 = vrcp.pop %v492
    %v494 = vmul.f32 %v492, %v493
    %v495 = vsub.f32 1.0, %v494
    %v496 = vmul.f32 %v493, %v495
    %v497 = vadd.f32 %v493, %v496
    %vm498 = vweird.f32 %v492
    %vm499 = vweird.f32 %v493
    %vm500 = vmor %vm498, %vm499
    %v501 = vsel %vm500, %v493, %v497
    %v502 = vand.u32 2147483647, %v492
    %vm503 = vcmp.eq.f32.partialorder %v502, 8.507059e+37
    %v504 = vand.u32 %v492, 2147483648
    %v505 = vor.u32 1.1754944e-38, %v504
    %v506 = vsel %vm503, %v505, %v501
    %v507 = vmul.f32 1.0, %v506
    %v508 = vmul.f32 %v487, %v466
    %v509 = vadd.f32 %v404, %v508
    %v510 = vtanh.pop %v509
    %v511 = vsub.f32 1.0, %v507
    %v512 = vmul.f32 %v511, %v510
    %v513 = vmul.f32 %v507, %v398
    %v514 = vadd.f32 %v512, %v513
    %s515 = scalar_lea.vmem %s0, 8
    %v516 = vld [vmem:[%s515] sm:$0x3]
    %s517 = scalar_lea.vmem %s0, 24
    %v518 = vld [vmem:[%s517] sm:$0x3]
    %s519 = scalar_lea.vmem %s0, 40
    %v520 = vld [vmem:[%s519] sm:$0x3]
    %v522 = vsel %vm53, %v514, 0
    %524 = vmatpush.msra.mxu0 0.0
    %525 = vmatpush.msra.mxu0 0.0
    %526 = vmatpush.msra.mxu0 0.0
    %527 = vmatpush.msra.mxu0 0.0
    %528 = vmatpush.msra.mxu0 0.0
    %529 = vmatpush.msra.mxu0 0.0
    %530 = vmatpush.msra.mxu0 0.0
    %531 = vmatpush.msra.mxu0 0.0
    %532 = vmatpush.msra.mxu0 0.0
    %533 = vmatpush.msra.mxu0 0.0
    %534 = vmatpush.msra.mxu0 0.0
    %535 = vmatpush.msra.mxu0 0.0
    %536 = vmatpush.msra.mxu0 %v36
    %537 = vmatpush.msra.mxu0 %v35
    %538 = vmatpush.msra.mxu0 %v34
    %539 = vmatpush.msra.mxu0 %v33
    %540 = vmatmul.f32.gmra.mxu0 %v522
    %v541 = vpop.f32.mrf.mxu0
    %v542 = vadd.f32 0.0, %v541
    %543 = vdwg.mxu0
    %544 = vmatpush.msra.mxu0 0.0
    %545 = vmatpush.msra.mxu0 0.0
    %546 = vmatpush.msra.mxu0 0.0
    %547 = vmatpush.msra.mxu0 0.0
    %548 = vmatpush.msra.mxu0 0.0
    %549 = vmatpush.msra.mxu0 0.0
    %550 = vmatpush.msra.mxu0 0.0
    %551 = vmatpush.msra.mxu0 0.0
    %552 = vmatpush.msra.mxu0 0.0
    %553 = vmatpush.msra.mxu0 0.0
    %554 = vmatpush.msra.mxu0 0.0
    %555 = vmatpush.msra.mxu0 0.0
    %556 = vmatpush.msra.mxu0 %v41
    %557 = vmatpush.msra.mxu0 %v40
    %558 = vmatpush.msra.mxu0 %v39
    %559 = vmatpush.msra.mxu0 %v38
    %560 = vmatmul.f32.gmra.mxu0 %v522
    %v561 = vpop.f32.mrf.mxu0
    %v562 = vadd.f32 0.0, %v561
    %563 = vdwg.mxu0
    %564 = vmatpush.msra.mxu0 0.0
    %565 = vmatpush.msra.mxu0 0.0
    %566 = vmatpush.msra.mxu0 0.0
    %567 = vmatpush.msra.mxu0 0.0
    %568 = vmatpush.msra.mxu0 0.0
    %569 = vmatpush.msra.mxu0 0.0
    %570 = vmatpush.msra.mxu0 0.0
    %571 = vmatpush.msra.mxu0 0.0
    %572 = vmatpush.msra.mxu0 0.0
    %573 = vmatpush.msra.mxu0 0.0
    %574 = vmatpush.msra.mxu0 0.0
    %575 = vmatpush.msra.mxu0 0.0
    %576 = vmatpush.msra.mxu0 %v46
    %577 = vmatpush.msra.mxu0 %v45
    %578 = vmatpush.msra.mxu0 %v44
    %579 = vmatpush.msra.mxu0 %v43
    %580 = vmatmul.f32.gmra.mxu0 %v522
    %v581 = vpop.f32.mrf.mxu0
    %v582 = vadd.f32 %v98, %v581
    %583 = vdwg.mxu0
    %v584 = vadd.f32 %v516, %v542
    %v585 = vxor.u32 %v584, 2147483648
    %v586 = vmul.f32 %v585, 1.442695
    %v587 = vpow.pop %v586
    %v588 = vadd.f32 %v587, 1.0
    %v589 = vrcp.pop %v588
    %v590 = vmul.f32 %v588, %v589
    %v591 = vsub.f32 1.0, %v590
    %v592 = vmul.f32 %v589, %v591
    %v593 = vadd.f32 %v589, %v592
    %vm594 = vweird.f32 %v588
    %vm595 = vweird.f32 %v589
    %vm596 = vmor %vm594, %vm595
    %v597 = vsel %vm596, %v589, %v593
    %v598 = vand.u32 2147483647, %v588
    %vm599 = vcmp.eq.f32.partialorder %v598, 8.507059e+37
    %v600 = vand.u32 %v588, 2147483648
    %v601 = vor.u32 1.1754944e-38, %v600
    %v602 = vsel %vm599, %v601, %v597
    %v603 = vmul.f32 1.0, %v602
    %v604 = vadd.f32 %v518, %v562
    %v605 = vxor.u32 %v604, 2147483648
    %v606 = vmul.f32 %v605, 1.442695
    %v607 = vpow.pop %v606
    %v608 = vadd.f32 %v607, 1.0
    %v609 = vrcp.pop %v608
    %v610 = vmul.f32 %v608, %v609
    %v611 = vsub.f32 1.0, %v610
    %v612 = vmul.f32 %v609, %v611
    %v613 = vadd.f32 %v609, %v612
    %vm614 = vweird.f32 %v608
    %vm615 = vweird.f32 %v609
    %vm616 = vmor %vm614, %vm615
    %v617 = vsel %vm616, %v609, %v613
    %v618 = vand.u32 2147483647, %v608
    %vm619 = vcmp.eq.f32.partialorder %v618, 8.507059e+37
    %v620 = vand.u32 %v608, 2147483648
    %v621 = vor.u32 1.1754944e-38, %v620
    %v622 = vsel %vm619, %v621, %v617
    %v623 = vmul.f32 1.0, %v622
    %v624 = vmul.f32 %v603, %v582
    %v625 = vadd.f32 %v520, %v624
    %v626 = vtanh.pop %v625
    %v627 = vsub.f32 1.0, %v623
    %v628 = vmul.f32 %v627, %v626
    %v629 = vmul.f32 %v623, %v514
    %v630 = vadd.f32 %v628, %v629
    %s631 = scalar_lea.vmem %s0, 10
    %v632 = vld [vmem:[%s631] sm:$0x3]
    %s633 = scalar_lea.vmem %s0, 26
    %v634 = vld [vmem:[%s633] sm:$0x3]
    %s635 = scalar_lea.vmem %s0, 42
    %v636 = vld [vmem:[%s635] sm:$0x3]
    %v638 = vsel %vm53, %v630, 0
    %640 = vmatpush.msra.mxu0 0.0
    %641 = vmatpush.msra.mxu0 0.0
    %642 = vmatpush.msra.mxu0 0.0
    %643 = vmatpush.msra.mxu0 0.0
    %644 = vmatpush.msra.mxu0 0.0
    %645 = vmatpush.msra.mxu0 0.0
    %646 = vmatpush.msra.mxu0 0.0
    %647 = vmatpush.msra.mxu0 0.0
    %648 = vmatpush.msra.mxu0 0.0
    %649 = vmatpush.msra.mxu0 0.0
    %650 = vmatpush.msra.mxu0 0.0
    %651 = vmatpush.msra.mxu0 0.0
    %652 = vmatpush.msra.mxu0 %v36
    %653 = vmatpush.msra.mxu0 %v35
    %654 = vmatpush.msra.mxu0 %v34
    %655 = vmatpush.msra.mxu0 %v33
    %656 = vmatmul.f32.gmra.mxu0 %v638
    %v657 = vpop.f32.mrf.mxu0
    %v658 = vadd.f32 0.0, %v657
    %659 = vdwg.mxu0
    %660 = vmatpush.msra.mxu0 0.0
    %661 = vmatpush.msra.mxu0 0.0
    %662 = vmatpush.msra.mxu0 0.0
    %663 = vmatpush.msra.mxu0 0.0
    %664 = vmatpush.msra.mxu0 0.0
    %665 = vmatpush.msra.mxu0 0.0
    %666 = vmatpush.msra.mxu0 0.0
    %667 = vmatpush.msra.mxu0 0.0
    %668 = vmatpush.msra.mxu0 0.0
    %669 = vmatpush.msra.mxu0 0.0
    %670 = vmatpush.msra.mxu0 0.0
    %671 = vmatpush.msra.mxu0 0.0
    %672 = vmatpush.msra.mxu0 %v41
    %673 = vmatpush.msra.mxu0 %v40
    %674 = vmatpush.msra.mxu0 %v39
    %675 = vmatpush.msra.mxu0 %v38
    %676 = vmatmul.f32.gmra.mxu0 %v638
    %v677 = vpop.f32.mrf.mxu0
    %v678 = vadd.f32 0.0, %v677
    %679 = vdwg.mxu0
    %680 = vmatpush.msra.mxu0 0.0
    %681 = vmatpush.msra.mxu0 0.0
    %682 = vmatpush.msra.mxu0 0.0
    %683 = vmatpush.msra.mxu0 0.0
    %684 = vmatpush.msra.mxu0 0.0
    %685 = vmatpush.msra.mxu0 0.0
    %686 = vmatpush.msra.mxu0 0.0
    %687 = vmatpush.msra.mxu0 0.0
    %688 = vmatpush.msra.mxu0 0.0
    %689 = vmatpush.msra.mxu0 0.0
    %690 = vmatpush.msra.mxu0 0.0
    %691 = vmatpush.msra.mxu0 0.0
    %692 = vmatpush.msra.mxu0 %v46
    %693 = vmatpush.msra.mxu0 %v45
    %694 = vmatpush.msra.mxu0 %v44
    %695 = vmatpush.msra.mxu0 %v43
    %696 = vmatmul.f32.gmra.mxu0 %v638
    %v697 = vpop.f32.mrf.mxu0
    %v698 = vadd.f32 %v98, %v697
    %699 = vdwg.mxu0
    %v700 = vadd.f32 %v632, %v658
    %v701 = vxor.u32 %v700, 2147483648
    %v702 = vmul.f32 %v701, 1.442695
    %v703 = vpow.pop %v702
    %v704 = vadd.f32 %v703, 1.0
    %v705 = vrcp.pop %v704
    %v706 = vmul.f32 %v704, %v705
    %v707 = vsub.f32 1.0, %v706
    %v708 = vmul.f32 %v705, %v707
    %v709 = vadd.f32 %v705, %v708
    %vm710 = vweird.f32 %v704
    %vm711 = vweird.f32 %v705
    %vm712 = vmor %vm710, %vm711
    %v713 = vsel %vm712, %v705, %v709
    %v714 = vand.u32 2147483647, %v704
    %vm715 = vcmp.eq.f32.partialorder %v714, 8.507059e+37
    %v716 = vand.u32 %v704, 2147483648
    %v717 = vor.u32 1.1754944e-38, %v716
    %v718 = vsel %vm715, %v717, %v713
    %v719 = vmul.f32 1.0, %v718
    %v720 = vadd.f32 %v634, %v678
    %v721 = vxor.u32 %v720, 2147483648
    %v722 = vmul.f32 %v721, 1.442695
    %v723 = vpow.pop %v722
    %v724 = vadd.f32 %v723, 1.0
    %v725 = vrcp.pop %v724
    %v726 = vmul.f32 %v724, %v725
    %v727 = vsub.f32 1.0, %v726
    %v728 = vmul.f32 %v725, %v727
    %v729 = vadd.f32 %v725, %v728
    %vm730 = vweird.f32 %v724
    %vm731 = vweird.f32 %v725
    %vm732 = vmor %vm730, %vm731
    %v733 = vsel %vm732, %v725, %v729
    %v734 = vand.u32 2147483647, %v724
    %vm735 = vcmp.eq.f32.partialorder %v734, 8.507059e+37
    %v736 = vand.u32 %v724, 2147483648
    %v737 = vor.u32 1.1754944e-38, %v736
    %v738 = vsel %vm735, %v737, %v733
    %v739 = vmul.f32 1.0, %v738
    %v740 = vmul.f32 %v719, %v698
    %v741 = vadd.f32 %v636, %v740
    %v742 = vtanh.pop %v741
    %v743 = vsub.f32 1.0, %v739
    %v744 = vmul.f32 %v743, %v742
    %v745 = vmul.f32 %v739, %v630
    %v746 = vadd.f32 %v744, %v745
    %s747 = scalar_lea.vmem %s0, 12
    %v748 = vld [vmem:[%s747] sm:$0x3]
    %s749 = scalar_lea.vmem %s0, 28
    %v750 = vld [vmem:[%s749] sm:$0x3]
    %s751 = scalar_lea.vmem %s0, 44
    %v752 = vld [vmem:[%s751] sm:$0x3]
    %v754 = vsel %vm53, %v746, 0
    %756 = vmatpush.msra.mxu0 0.0
    %757 = vmatpush.msra.mxu0 0.0
    %758 = vmatpush.msra.mxu0 0.0
    %759 = vmatpush.msra.mxu0 0.0
    %760 = vmatpush.msra.mxu0 0.0
    %761 = vmatpush.msra.mxu0 0.0
    %762 = vmatpush.msra.mxu0 0.0
    %763 = vmatpush.msra.mxu0 0.0
    %764 = vmatpush.msra.mxu0 0.0
    %765 = vmatpush.msra.mxu0 0.0
    %766 = vmatpush.msra.mxu0 0.0
    %767 = vmatpush.msra.mxu0 0.0
    %768 = vmatpush.msra.mxu0 %v36
    %769 = vmatpush.msra.mxu0 %v35
    %770 = vmatpush.msra.mxu0 %v34
    %771 = vmatpush.msra.mxu0 %v33
    %772 = vmatmul.f32.gmra.mxu0 %v754
    %v773 = vpop.f32.mrf.mxu0
    %v774 = vadd.f32 0.0, %v773
    %775 = vdwg.mxu0
    %776 = vmatpush.msra.mxu0 0.0
    %777 = vmatpush.msra.mxu0 0.0
    %778 = vmatpush.msra.mxu0 0.0
    %779 = vmatpush.msra.mxu0 0.0
    %780 = vmatpush.msra.mxu0 0.0
    %781 = vmatpush.msra.mxu0 0.0
    %782 = vmatpush.msra.mxu0 0.0
    %783 = vmatpush.msra.mxu0 0.0
    %784 = vmatpush.msra.mxu0 0.0
    %785 = vmatpush.msra.mxu0 0.0
    %786 = vmatpush.msra.mxu0 0.0
    %787 = vmatpush.msra.mxu0 0.0
    %788 = vmatpush.msra.mxu0 %v41
    %789 = vmatpush.msra.mxu0 %v40
    %790 = vmatpush.msra.mxu0 %v39
    %791 = vmatpush.msra.mxu0 %v38
    %792 = vmatmul.f32.gmra.mxu0 %v754
    %v793 = vpop.f32.mrf.mxu0
    %v794 = vadd.f32 0.0, %v793
    %795 = vdwg.mxu0
    %796 = vmatpush.msra.mxu0 0.0
    %797 = vmatpush.msra.mxu0 0.0
    %798 = vmatpush.msra.mxu0 0.0
    %799 = vmatpush.msra.mxu0 0.0
    %800 = vmatpush.msra.mxu0 0.0
    %801 = vmatpush.msra.mxu0 0.0
    %802 = vmatpush.msra.mxu0 0.0
    %803 = vmatpush.msra.mxu0 0.0
    %804 = vmatpush.msra.mxu0 0.0
    %805 = vmatpush.msra.mxu0 0.0
    %806 = vmatpush.msra.mxu0 0.0
    %807 = vmatpush.msra.mxu0 0.0
    %808 = vmatpush.msra.mxu0 %v46
    %809 = vmatpush.msra.mxu0 %v45
    %810 = vmatpush.msra.mxu0 %v44
    %811 = vmatpush.msra.mxu0 %v43
    %812 = vmatmul.f32.gmra.mxu0 %v754
    %v813 = vpop.f32.mrf.mxu0
    %v814 = vadd.f32 %v98, %v813
    %815 = vdwg.mxu0
    %v816 = vadd.f32 %v748, %v774
    %v817 = vxor.u32 %v816, 2147483648
    %v818 = vmul.f32 %v817, 1.442695
    %v819 = vpow.pop %v818
    %v820 = vadd.f32 %v819, 1.0
    %v821 = vrcp.pop %v820
    %v822 = vmul.f32 %v820, %v821
    %v823 = vsub.f32 1.0, %v822
    %v824 = vmul.f32 %v821, %v823
    %v825 = vadd.f32 %v821, %v824
    %vm826 = vweird.f32 %v820
    %vm827 = vweird.f32 %v821
    %vm828 = vmor %vm826, %vm827
    %v829 = vsel %vm828, %v821, %v825
    %v830 = vand.u32 2147483647, %v820
    %vm831 = vcmp.eq.f32.partialorder %v830, 8.507059e+37
    %v832 = vand.u32 %v820, 2147483648
    %v833 = vor.u32 1.1754944e-38, %v832
    %v834 = vsel %vm831, %v833, %v829
    %v835 = vmul.f32 1.0, %v834
    %v836 = vadd.f32 %v750, %v794
    %v837 = vxor.u32 %v836, 2147483648
    %v838 = vmul.f32 %v837, 1.442695
    %v839 = vpow.pop %v838
    %v840 = vadd.f32 %v839, 1.0
    %v841 = vrcp.pop %v840
    %v842 = vmul.f32 %v840, %v841
    %v843 = vsub.f32 1.0, %v842
    %v844 = vmul.f32 %v841, %v843
    %v845 = vadd.f32 %v841, %v844
    %vm846 = vweird.f32 %v840
    %vm847 = vweird.f32 %v841
    %vm848 = vmor %vm846, %vm847
    %v849 = vsel %vm848, %v841, %v845
    %v850 = vand.u32 2147483647, %v840
    %vm851 = vcmp.eq.f32.partialorder %v850, 8.507059e+37
    %v852 = vand.u32 %v840, 2147483648
    %v853 = vor.u32 1.1754944e-38, %v852
    %v854 = vsel %vm851, %v853, %v849
    %v855 = vmul.f32 1.0, %v854
    %v856 = vmul.f32 %v835, %v814
    %v857 = vadd.f32 %v752, %v856
    %v858 = vtanh.pop %v857
    %v859 = vsub.f32 1.0, %v855
    %v860 = vmul.f32 %v859, %v858
    %v861 = vmul.f32 %v855, %v746
    %v862 = vadd.f32 %v860, %v861
    %s863 = scalar_lea.vmem %s0, 14
    %v864 = vld [vmem:[%s863] sm:$0x3]
    %s865 = scalar_lea.vmem %s0, 30
    %v866 = vld [vmem:[%s865] sm:$0x3]
    %s867 = scalar_lea.vmem %s0, 46
    %v868 = vld [vmem:[%s867] sm:$0x3]
    %v870 = vsel %vm53, %v862, 0
    %872 = vmatpush.msra.mxu0 0.0
    %873 = vmatpush.msra.mxu0 0.0
    %874 = vmatpush.msra.mxu0 0.0
    %875 = vmatpush.msra.mxu0 0.0
    %876 = vmatpush.msra.mxu0 0.0
    %877 = vmatpush.msra.mxu0 0.0
    %878 = vmatpush.msra.mxu0 0.0
    %879 = vmatpush.msra.mxu0 0.0
    %880 = vmatpush.msra.mxu0 0.0
    %881 = vmatpush.msra.mxu0 0.0
    %882 = vmatpush.msra.mxu0 0.0
    %883 = vmatpush.msra.mxu0 0.0
    %884 = vmatpush.msra.mxu0 %v36
    %885 = vmatpush.msra.mxu0 %v35
    %886 = vmatpush.msra.mxu0 %v34
    %887 = vmatpush.msra.mxu0 %v33
    %888 = vmatmul.f32.gmra.mxu0 %v870
    %v889 = vpop.f32.mrf.mxu0
    %v890 = vadd.f32 0.0, %v889
    %891 = vdwg.mxu0
    %892 = vmatpush.msra.mxu0 0.0
    %893 = vmatpush.msra.mxu0 0.0
    %894 = vmatpush.msra.mxu0 0.0
    %895 = vmatpush.msra.mxu0 0.0
    %896 = vmatpush.msra.mxu0 0.0
    %897 = vmatpush.msra.mxu0 0.0
    %898 = vmatpush.msra.mxu0 0.0
    %899 = vmatpush.msra.mxu0 0.0
    %900 = vmatpush.msra.mxu0 0.0
    %901 = vmatpush.msra.mxu0 0.0
    %902 = vmatpush.msra.mxu0 0.0
    %903 = vmatpush.msra.mxu0 0.0
    %904 = vmatpush.msra.mxu0 %v41
    %905 = vmatpush.msra.mxu0 %v40
    %906 = vmatpush.msra.mxu0 %v39
    %907 = vmatpush.msra.mxu0 %v38
    %908 = vmatmul.f32.gmra.mxu0 %v870
    %v909 = vpop.f32.mrf.mxu0
    %v910 = vadd.f32 0.0, %v909
    %911 = vdwg.mxu0
    %912 = vmatpush.msra.mxu0 0.0
    %913 = vmatpush.msra.mxu0 0.0
    %914 = vmatpush.msra.mxu0 0.0
    %915 = vmatpush.msra.mxu0 0.0
    %916 = vmatpush.msra.mxu0 0.0
    %917 = vmatpush.msra.mxu0 0.0
    %918 = vmatpush.msra.mxu0 0.0
    %919 = vmatpush.msra.mxu0 0.0
    %920 = vmatpush.msra.mxu0 0.0
    %921 = vmatpush.msra.mxu0 0.0
    %922 = vmatpush.msra.mxu0 0.0
    %923 = vmatpush.msra.mxu0 0.0
    %924 = vmatpush.msra.mxu0 %v46
    %925 = vmatpush.msra.mxu0 %v45
    %926 = vmatpush.msra.mxu0 %v44
    %927 = vmatpush.msra.mxu0 %v43
    %928 = vmatmul.f32.gmra.mxu0 %v870
    %v929 = vpop.f32.mrf.mxu0
    %v930 = vadd.f32 %v98, %v929
    %931 = vdwg.mxu0
    %v932 = vadd.f32 %v864, %v890
    %v933 = vxor.u32 %v932, 2147483648
    %v934 = vmul.f32 %v933, 1.442695
    %v935 = vpow.pop %v934
    %v936 = vadd.f32 %v935, 1.0
    %v937 = vrcp.pop %v936
    %v938 = vmul.f32 %v936, %v937
    %v939 = vsub.f32 1.0, %v938
    %v940 = vmul.f32 %v937, %v939
    %v941 = vadd.f32 %v937, %v940
    %vm942 = vweird.f32 %v936
    %vm943 = vweird.f32 %v937
    %vm944 = vmor %vm942, %vm943
    %v945 = vsel %vm944, %v937, %v941
    %v946 = vand.u32 2147483647, %v936
    %vm947 = vcmp.eq.f32.partialorder %v946, 8.507059e+37
    %v948 = vand.u32 %v936, 2147483648
    %v949 = vor.u32 1.1754944e-38, %v948
    %v950 = vsel %vm947, %v949, %v945
    %v951 = vmul.f32 1.0, %v950
    %v952 = vadd.f32 %v866, %v910
    %v953 = vxor.u32 %v952, 2147483648
    %v954 = vmul.f32 %v953, 1.442695
    %v955 = vpow.pop %v954
    %v956 = vadd.f32 %v955, 1.0
    %v957 = vrcp.pop %v956
    %v958 = vmul.f32 %v956, %v957
    %v959 = vsub.f32 1.0, %v958
    %v960 = vmul.f32 %v957, %v959
    %v961 = vadd.f32 %v957, %v960
    %vm962 = vweird.f32 %v956
    %vm963 = vweird.f32 %v957
    %vm964 = vmor %vm962, %vm963
    %v965 = vsel %vm964, %v957, %v961
    %v966 = vand.u32 2147483647, %v956
    %vm967 = vcmp.eq.f32.partialorder %v966, 8.507059e+37
    %v968 = vand.u32 %v956, 2147483648
    %v969 = vor.u32 1.1754944e-38, %v968
    %v970 = vsel %vm967, %v969, %v965
    %v971 = vmul.f32 1.0, %v970
    %v972 = vmul.f32 %v951, %v930
    %v973 = vadd.f32 %v868, %v972
    %v974 = vtanh.pop %v973
    %v975 = vsub.f32 1.0, %v971
    %v976 = vmul.f32 %v975, %v974
    %v977 = vmul.f32 %v971, %v862
    %v978 = vadd.f32 %v976, %v977
    %v979 = vld [vmem:[%s4] sm:$0xff]
    %v980 = vld [vmem:[%s4 + $0x8] sm:$0xff]
    %v981 = vld [vmem:[%s4 + $0x10] sm:$0xff]
    %v982 = vld [vmem:[%s4 + $0x18] sm:$0xff]
    %s983 = scalar_lea.vmem %s4, 32
    %v984 = vld [vmem:[%s983] sm:$0xff]
    %v985 = vld [vmem:[%s983 + $0x8] sm:$0xff]
    %v986 = vld [vmem:[%s983 + $0x10] sm:$0xff]
    %v987 = vld [vmem:[%s983 + $0x18] sm:$0xff]
    %s988 = scalar_lea.vmem %s4, 64
    %v989 = vld [vmem:[%s988] sm:$0xff]
    %v990 = vld [vmem:[%s988 + $0x8] sm:$0xff]
    %v991 = vld [vmem:[%s988 + $0x10] sm:$0xff]
    %v992 = vld [vmem:[%s988 + $0x18] sm:$0xff]
    %v993 = vld [vmem:[%s5] sm:$0x1]
    %s994 = scalar_lea.vmem %s3, 14
    %v995 = vld [vmem:[%s994] sm:$0x3]
    %s996 = scalar_lea.vmem %s3, 30
    %v997 = vld [vmem:[%s996] sm:$0x3]
    %s998 = scalar_lea.vmem %s3, 46
    %v999 = vld [vmem:[%s998] sm:$0x3]
    %1000 = vmatpush.msra.mxu0 0.0
    %1001 = vmatpush.msra.mxu0 0.0
    %1002 = vmatpush.msra.mxu0 0.0
    %1003 = vmatpush.msra.mxu0 0.0
    %1004 = vmatpush.msra.mxu0 0.0
    %1005 = vmatpush.msra.mxu0 0.0
    %1006 = vmatpush.msra.mxu0 0.0
    %1007 = vmatpush.msra.mxu0 0.0
    %1008 = vmatpush.msra.mxu0 0.0
    %1009 = vmatpush.msra.mxu0 0.0
    %1010 = vmatpush.msra.mxu0 0.0
    %1011 = vmatpush.msra.mxu0 0.0
    %1012 = vmatpush.msra.mxu0 %v982
    %1013 = vmatpush.msra.mxu0 %v981
    %1014 = vmatpush.msra.mxu0 %v980
    %1015 = vmatpush.msra.mxu0 %v979
    %1016 = vmatmul.f32.gmra.mxu0 %v55
    %v1017 = vpop.f32.mrf.mxu0
    %v1018 = vadd.f32 0.0, %v1017
    %1019 = vdwg.mxu0
    %1020 = vmatpush.msra.mxu0 0.0
    %1021 = vmatpush.msra.mxu0 0.0
    %1022 = vmatpush.msra.mxu0 0.0
    %1023 = vmatpush.msra.mxu0 0.0
    %1024 = vmatpush.msra.mxu0 0.0
    %1025 = vmatpush.msra.mxu0 0.0
    %1026 = vmatpush.msra.mxu0 0.0
    %1027 = vmatpush.msra.mxu0 0.0
    %1028 = vmatpush.msra.mxu0 0.0
    %1029 = vmatpush.msra.mxu0 0.0
    %1030 = vmatpush.msra.mxu0 0.0
    %1031 = vmatpush.msra.mxu0 0.0
    %1032 = vmatpush.msra.mxu0 %v987
    %1033 = vmatpush.msra.mxu0 %v986
    %1034 = vmatpush.msra.mxu0 %v985
    %1035 = vmatpush.msra.mxu0 %v984
    %1036 = vmatmul.f32.gmra.mxu0 %v55
    %v1037 = vpop.f32.mrf.mxu0
    %v1038 = vadd.f32 0.0, %v1037
    %1039 = vdwg.mxu0
    %v1041 = vperm.slane %v993, 0
    %1043 = vmatpush.msra.mxu0 0.0
    %1044 = vmatpush.msra.mxu0 0.0
    %1045 = vmatpush.msra.mxu0 0.0
    %1046 = vmatpush.msra.mxu0 0.0
    %1047 = vmatpush.msra.mxu0 0.0
    %1048 = vmatpush.msra.mxu0 0.0
    %1049 = vmatpush.msra.mxu0 0.0
    %1050 = vmatpush.msra.mxu0 0.0
    %1051 = vmatpush.msra.mxu0 0.0
    %1052 = vmatpush.msra.mxu0 0.0
    %1053 = vmatpush.msra.mxu0 0.0
    %1054 = vmatpush.msra.mxu0 0.0
    %1055 = vmatpush.msra.mxu0 %v992
    %1056 = vmatpush.msra.mxu0 %v991
    %1057 = vmatpush.msra.mxu0 %v990
    %1058 = vmatpush.msra.mxu0 %v989
    %1059 = vmatmul.f32.gmra.mxu0 %v55
    %v1060 = vpop.f32.mrf.mxu0
    %v1061 = vadd.f32 %v1041, %v1060
    %1062 = vdwg.mxu0
    %v1063 = vadd.f32 %v995, %v1018
    %v1064 = vxor.u32 %v1063, 2147483648
    %v1065 = vmul.f32 %v1064, 1.442695
    %v1066 = vpow.pop %v1065
    %v1067 = vadd.f32 %v1066, 1.0
    %v1068 = vrcp.pop %v1067
    %v1069 = vmul.f32 %v1067, %v1068
    %v1070 = vsub.f32 1.0, %v1069
    %v1071 = vmul.f32 %v1068, %v1070
    %v1072 = vadd.f32 %v1068, %v1071
    %vm1073 = vweird.f32 %v1067
    %vm1074 = vweird.f32 %v1068
    %vm1075 = vmor %vm1073, %vm1074
    %v1076 = vsel %vm1075, %v1068, %v1072
    %v1077 = vand.u32 2147483647, %v1067
    %vm1078 = vcmp.eq.f32.partialorder %v1077, 8.507059e+37
    %v1079 = vand.u32 %v1067, 2147483648
    %v1080 = vor.u32 1.1754944e-38, %v1079
    %v1081 = vsel %vm1078, %v1080, %v1076
    %v1082 = vmul.f32 1.0, %v1081
    %v1083 = vadd.f32 %v997, %v1038
    %v1084 = vxor.u32 %v1083, 2147483648
    %v1085 = vmul.f32 %v1084, 1.442695
    %v1086 = vpow.pop %v1085
    %v1087 = vadd.f32 %v1086, 1.0
    %v1088 = vrcp.pop %v1087
    %v1089 = vmul.f32 %v1087, %v1088
    %v1090 = vsub.f32 1.0, %v1089
    %v1091 = vmul.f32 %v1088, %v1090
    %v1092 = vadd.f32 %v1088, %v1091
    %vm1093 = vweird.f32 %v1087
    %vm1094 = vweird.f32 %v1088
    %vm1095 = vmor %vm1093, %vm1094
    %v1096 = vsel %vm1095, %v1088, %v1092
    %v1097 = vand.u32 2147483647, %v1087
    %vm1098 = vcmp.eq.f32.partialorder %v1097, 8.507059e+37
    %v1099 = vand.u32 %v1087, 2147483648
    %v1100 = vor.u32 1.1754944e-38, %v1099
    %v1101 = vsel %vm1098, %v1100, %v1096
    %v1102 = vmul.f32 1.0, %v1101
    %v1103 = vmul.f32 %v1082, %v1061
    %v1104 = vadd.f32 %v999, %v1103
    %v1105 = vtanh.pop %v1104
    %v1106 = vsub.f32 1.0, %v1102
    %v1107 = vmul.f32 %v1106, %v1105
    %v1108 = vmul.f32 %v1102, 0.0
    %v1109 = vadd.f32 %v1107, %v1108
    %s1110 = scalar_lea.vmem %s3, 12
    %v1111 = vld [vmem:[%s1110] sm:$0x3]
    %s1112 = scalar_lea.vmem %s3, 28
    %v1113 = vld [vmem:[%s1112] sm:$0x3]
    %s1114 = scalar_lea.vmem %s3, 44
    %v1115 = vld [vmem:[%s1114] sm:$0x3]
    %v1117 = vsel %vm53, %v1109, 0
    %1119 = vmatpush.msra.mxu0 0.0
    %1120 = vmatpush.msra.mxu0 0.0
    %1121 = vmatpush.msra.mxu0 0.0
    %1122 = vmatpush.msra.mxu0 0.0
    %1123 = vmatpush.msra.mxu0 0.0
    %1124 = vmatpush.msra.mxu0 0.0
    %1125 = vmatpush.msra.mxu0 0.0
    %1126 = vmatpush.msra.mxu0 0.0
    %1127 = vmatpush.msra.mxu0 0.0
    %1128 = vmatpush.msra.mxu0 0.0
    %1129 = vmatpush.msra.mxu0 0.0
    %1130 = vmatpush.msra.mxu0 0.0
    %1131 = vmatpush.msra.mxu0 %v982
    %1132 = vmatpush.msra.mxu0 %v981
    %1133 = vmatpush.msra.mxu0 %v980
    %1134 = vmatpush.msra.mxu0 %v979
    %1135 = vmatmul.f32.gmra.mxu0 %v1117
    %v1136 = vpop.f32.mrf.mxu0
    %v1137 = vadd.f32 0.0, %v1136
    %1138 = vdwg.mxu0
    %1139 = vmatpush.msra.mxu0 0.0
    %1140 = vmatpush.msra.mxu0 0.0
    %1141 = vmatpush.msra.mxu0 0.0
    %1142 = vmatpush.msra.mxu0 0.0
    %1143 = vmatpush.msra.mxu0 0.0
    %1144 = vmatpush.msra.mxu0 0.0
    %1145 = vmatpush.msra.mxu0 0.0
    %1146 = vmatpush.msra.mxu0 0.0
    %1147 = vmatpush.msra.mxu0 0.0
    %1148 = vmatpush.msra.mxu0 0.0
    %1149 = vmatpush.msra.mxu0 0.0
    %1150 = vmatpush.msra.mxu0 0.0
    %1151 = vmatpush.msra.mxu0 %v987
    %1152 = vmatpush.msra.mxu0 %v986
    %1153 = vmatpush.msra.mxu0 %v985
    %1154 = vmatpush.msra.mxu0 %v984
    %1155 = vmatmul.f32.gmra.mxu0 %v1117
    %v1156 = vpop.f32.mrf.mxu0
    %v1157 = vadd.f32 0.0, %v1156
    %1158 = vdwg.mxu0
    %1159 = vmatpush.msra.mxu0 0.0
    %1160 = vmatpush.msra.mxu0 0.0
    %1161 = vmatpush.msra.mxu0 0.0
    %1162 = vmatpush.msra.mxu0 0.0
    %1163 = vmatpush.msra.mxu0 0.0
    %1164 = vmatpush.msra.mxu0 0.0
    %1165 = vmatpush.msra.mxu0 0.0
    %1166 = vmatpush.msra.mxu0 0.0
    %1167 = vmatpush.msra.mxu0 0.0
    %1168 = vmatpush.msra.mxu0 0.0
    %1169 = vmatpush.msra.mxu0 0.0
    %1170 = vmatpush.msra.mxu0 0.0
    %1171 = vmatpush.msra.mxu0 %v992
    %1172 = vmatpush.msra.mxu0 %v991
    %1173 = vmatpush.msra.mxu0 %v990
    %1174 = vmatpush.msra.mxu0 %v989
    %1175 = vmatmul.f32.gmra.mxu0 %v1117
    %v1176 = vpop.f32.mrf.mxu0
    %v1177 = vadd.f32 %v1041, %v1176
    %1178 = vdwg.mxu0
    %v1179 = vadd.f32 %v1111, %v1137
    %v1180 = vxor.u32 %v1179, 2147483648
    %v1181 = vmul.f32 %v1180, 1.442695
    %v1182 = vpow.pop %v1181
    %v1183 = vadd.f32 %v1182, 1.0
    %v1184 = vrcp.pop %v1183
    %v1185 = vmul.f32 %v1183, %v1184
    %v1186 = vsub.f32 1.0, %v1185
    %v1187 = vmul.f32 %v1184, %v1186
    %v1188 = vadd.f32 %v1184, %v1187
    %vm1189 = vweird.f32 %v1183
    %vm1190 = vweird.f32 %v1184
    %vm1191 = vmor %vm1189, %vm1190
    %v1192 = vsel %vm1191, %v1184, %v1188
    %v1193 = vand.u32 2147483647, %v1183
    %vm1194 = vcmp.eq.f32.partialorder %v1193, 8.507059e+37
    %v1195 = vand.u32 %v1183, 2147483648
    %v1196 = vor.u32 1.1754944e-38, %v1195
    %v1197 = vsel %vm1194, %v1196, %v1192
    %v1198 = vmul.f32 1.0, %v1197
    %v1199 = vadd.f32 %v1113, %v1157
    %v1200 = vxor.u32 %v1199, 2147483648
    %v1201 = vmul.f32 %v1200, 1.442695
    %v1202 = vpow.pop %v1201
    %v1203 = vadd.f32 %v1202, 1.0
    %v1204 = vrcp.pop %v1203
    %v1205 = vmul.f32 %v1203, %v1204
    %v1206 = vsub.f32 1.0, %v1205
    %v1207 = vmul.f32 %v1204, %v1206
    %v1208 = vadd.f32 %v1204, %v1207
    %vm1209 = vweird.f32 %v1203
    %vm1210 = vweird.f32 %v1204
    %vm1211 = vmor %vm1209, %vm1210
    %v1212 = vsel %vm1211, %v1204, %v1208
    %v1213 = vand.u32 2147483647, %v1203
    %vm1214 = vcmp.eq.f32.partialorder %v1213, 8.507059e+37
    %v1215 = vand.u32 %v1203, 2147483648
    %v1216 = vor.u32 1.1754944e-38, %v1215
    %v1217 = vsel %vm1214, %v1216, %v1212
    %v1218 = vmul.f32 1.0, %v1217
    %v1219 = vmul.f32 %v1198, %v1177
    %v1220 = vadd.f32 %v1115, %v1219
    %v1221 = vtanh.pop %v1220
    %v1222 = vsub.f32 1.0, %v1218
    %v1223 = vmul.f32 %v1222, %v1221
    %v1224 = vmul.f32 %v1218, %v1109
    %v1225 = vadd.f32 %v1223, %v1224
    %s1226 = scalar_lea.vmem %s3, 10
    %v1227 = vld [vmem:[%s1226] sm:$0x3]
    %s1228 = scalar_lea.vmem %s3, 26
    %v1229 = vld [vmem:[%s1228] sm:$0x3]
    %s1230 = scalar_lea.vmem %s3, 42
    %v1231 = vld [vmem:[%s1230] sm:$0x3]
    %v1233 = vsel %vm53, %v1225, 0
    %1235 = vmatpush.msra.mxu0 0.0
    %1236 = vmatpush.msra.mxu0 0.0
    %1237 = vmatpush.msra.mxu0 0.0
    %1238 = vmatpush.msra.mxu0 0.0
    %1239 = vmatpush.msra.mxu0 0.0
    %1240 = vmatpush.msra.mxu0 0.0
    %1241 = vmatpush.msra.mxu0 0.0
    %1242 = vmatpush.msra.mxu0 0.0
    %1243 = vmatpush.msra.mxu0 0.0
    %1244 = vmatpush.msra.mxu0 0.0
    %1245 = vmatpush.msra.mxu0 0.0
    %1246 = vmatpush.msra.mxu0 0.0
    %1247 = vmatpush.msra.mxu0 %v982
    %1248 = vmatpush.msra.mxu0 %v981
    %1249 = vmatpush.msra.mxu0 %v980
    %1250 = vmatpush.msra.mxu0 %v979
    %1251 = vmatmul.f32.gmra.mxu0 %v1233
    %v1252 = vpop.f32.mrf.mxu0
    %v1253 = vadd.f32 0.0, %v1252
    %1254 = vdwg.mxu0
    %1255 = vmatpush.msra.mxu0 0.0
    %1256 = vmatpush.msra.mxu0 0.0
    %1257 = vmatpush.msra.mxu0 0.0
    %1258 = vmatpush.msra.mxu0 0.0
    %1259 = vmatpush.msra.mxu0 0.0
    %1260 = vmatpush.msra.mxu0 0.0
    %1261 = vmatpush.msra.mxu0 0.0
    %1262 = vmatpush.msra.mxu0 0.0
    %1263 = vmatpush.msra.mxu0 0.0
    %1264 = vmatpush.msra.mxu0 0.0
    %1265 = vmatpush.msra.mxu0 0.0
    %1266 = vmatpush.msra.mxu0 0.0
    %1267 = vmatpush.msra.mxu0 %v987
    %1268 = vmatpush.msra.mxu0 %v986
    %1269 = vmatpush.msra.mxu0 %v985
    %1270 = vmatpush.msra.mxu0 %v984
    %1271 = vmatmul.f32.gmra.mxu0 %v1233
    %v1272 = vpop.f32.mrf.mxu0
    %v1273 = vadd.f32 0.0, %v1272
    %1274 = vdwg.mxu0
    %1275 = vmatpush.msra.mxu0 0.0
    %1276 = vmatpush.msra.mxu0 0.0
    %1277 = vmatpush.msra.mxu0 0.0
    %1278 = vmatpush.msra.mxu0 0.0
    %1279 = vmatpush.msra.mxu0 0.0
    %1280 = vmatpush.msra.mxu0 0.0
    %1281 = vmatpush.msra.mxu0 0.0
    %1282 = vmatpush.msra.mxu0 0.0
    %1283 = vmatpush.msra.mxu0 0.0
    %1284 = vmatpush.msra.mxu0 0.0
    %1285 = vmatpush.msra.mxu0 0.0
    %1286 = vmatpush.msra.mxu0 0.0
    %1287 = vmatpush.msra.mxu0 %v992
    %1288 = vmatpush.msra.mxu0 %v991
    %1289 = vmatpush.msra.mxu0 %v990
    %1290 = vmatpush.msra.mxu0 %v989
    %1291 = vmatmul.f32.gmra.mxu0 %v1233
    %v1292 = vpop.f32.mrf.mxu0
    %v1293 = vadd.f32 %v1041, %v1292
    %1294 = vdwg.mxu0
    %v1295 = vadd.f32 %v1227, %v1253
    %v1296 = vxor.u32 %v1295, 2147483648
    %v1297 = vmul.f32 %v1296, 1.442695
    %v1298 = vpow.pop %v1297
    %v1299 = vadd.f32 %v1298, 1.0
    %v1300 = vrcp.pop %v1299
    %v1301 = vmul.f32 %v1299, %v1300
    %v1302 = vsub.f32 1.0, %v1301
    %v1303 = vmul.f32 %v1300, %v1302
    %v1304 = vadd.f32 %v1300, %v1303
    %vm1305 = vweird.f32 %v1299
    %vm1306 = vweird.f32 %v1300
    %vm1307 = vmor %vm1305, %vm1306
    %v1308 = vsel %vm1307, %v1300, %v1304
    %v1309 = vand.u32 2147483647, %v1299
    %vm1310 = vcmp.eq.f32.partialorder %v1309, 8.507059e+37
    %v1311 = vand.u32 %v1299, 2147483648
    %v1312 = vor.u32 1.1754944e-38, %v1311
    %v1313 = vsel %vm1310, %v1312, %v1308
    %v1314 = vmul.f32 1.0, %v1313
    %v1315 = vadd.f32 %v1229, %v1273
    %v1316 = vxor.u32 %v1315, 2147483648
    %v1317 = vmul.f32 %v1316, 1.442695
    %v1318 = vpow.pop %v1317
    %v1319 = vadd.f32 %v1318, 1.0
    %v1320 = vrcp.pop %v1319
    %v1321 = vmul.f32 %v1319, %v1320
    %v1322 = vsub.f32 1.0, %v1321
    %v1323 = vmul.f32 %v1320, %v1322
    %v1324 = vadd.f32 %v1320, %v1323
    %vm1325 = vweird.f32 %v1319
    %vm1326 = vweird.f32 %v1320
    %vm1327 = vmor %vm1325, %vm1326
    %v1328 = vsel %vm1327, %v1320, %v1324
    %v1329 = vand.u32 2147483647, %v1319
    %vm1330 = vcmp.eq.f32.partialorder %v1329, 8.507059e+37
    %v1331 = vand.u32 %v1319, 2147483648
    %v1332 = vor.u32 1.1754944e-38, %v1331
    %v1333 = vsel %vm1330, %v1332, %v1328
    %v1334 = vmul.f32 1.0, %v1333
    %v1335 = vmul.f32 %v1314, %v1293
    %v1336 = vadd.f32 %v1231, %v1335
    %v1337 = vtanh.pop %v1336
    %v1338 = vsub.f32 1.0, %v1334
    %v1339 = vmul.f32 %v1338, %v1337
    %v1340 = vmul.f32 %v1334, %v1225
    %v1341 = vadd.f32 %v1339, %v1340
    %s1342 = scalar_lea.vmem %s3, 8
    %v1343 = vld [vmem:[%s1342] sm:$0x3]
    %s1344 = scalar_lea.vmem %s3, 24
    %v1345 = vld [vmem:[%s1344] sm:$0x3]
    %s1346 = scalar_lea.vmem %s3, 40
    %v1347 = vld [vmem:[%s1346] sm:$0x3]
    %v1349 = vsel %vm53, %v1341, 0
    %1351 = vmatpush.msra.mxu0 0.0
    %1352 = vmatpush.msra.mxu0 0.0
    %1353 = vmatpush.msra.mxu0 0.0
    %1354 = vmatpush.msra.mxu0 0.0
    %1355 = vmatpush.msra.mxu0 0.0
    %1356 = vmatpush.msra.mxu0 0.0
    %1357 = vmatpush.msra.mxu0 0.0
    %1358 = vmatpush.msra.mxu0 0.0
    %1359 = vmatpush.msra.mxu0 0.0
    %1360 = vmatpush.msra.mxu0 0.0
    %1361 = vmatpush.msra.mxu0 0.0
    %1362 = vmatpush.msra.mxu0 0.0
    %1363 = vmatpush.msra.mxu0 %v982
    %1364 = vmatpush.msra.mxu0 %v981
    %1365 = vmatpush.msra.mxu0 %v980
    %1366 = vmatpush.msra.mxu0 %v979
    %1367 = vmatmul.f32.gmra.mxu0 %v1349
    %v1368 = vpop.f32.mrf.mxu0
    %v1369 = vadd.f32 0.0, %v1368
    %1370 = vdwg.mxu0
    %1371 = vmatpush.msra.mxu0 0.0
    %1372 = vmatpush.msra.mxu0 0.0
    %1373 = vmatpush.msra.mxu0 0.0
    %1374 = vmatpush.msra.mxu0 0.0
    %1375 = vmatpush.msra.mxu0 0.0
    %1376 = vmatpush.msra.mxu0 0.0
    %1377 = vmatpush.msra.mxu0 0.0
    %1378 = vmatpush.msra.mxu0 0.0
    %1379 = vmatpush.msra.mxu0 0.0
    %1380 = vmatpush.msra.mxu0 0.0
    %1381 = vmatpush.msra.mxu0 0.0
    %1382 = vmatpush.msra.mxu0 0.0
    %1383 = vmatpush.msra.mxu0 %v987
    %1384 = vmatpush.msra.mxu0 %v986
    %1385 = vmatpush.msra.mxu0 %v985
    %1386 = vmatpush.msra.mxu0 %v984
    %1387 = vmatmul.f32.gmra.mxu0 %v1349
    %v1388 = vpop.f32.mrf.mxu0
    %v1389 = vadd.f32 0.0, %v1388
    %1390 = vdwg.mxu0
    %1391 = vmatpush.msra.mxu0 0.0
    %1392 = vmatpush.msra.mxu0 0.0
    %1393 = vmatpush.msra.mxu0 0.0
    %1394 = vmatpush.msra.mxu0 0.0
    %1395 = vmatpush.msra.mxu0 0.0
    %1396 = vmatpush.msra.mxu0 0.0
    %1397 = vmatpush.msra.mxu0 0.0
    %1398 = vmatpush.msra.mxu0 0.0
    %1399 = vmatpush.msra.mxu0 0.0
    %1400 = vmatpush.msra.mxu0 0.0
    %1401 = vmatpush.msra.mxu0 0.0
    %1402 = vmatpush.msra.mxu0 0.0
    %1403 = vmatpush.msra.mxu0 %v992
    %1404 = vmatpush.msra.mxu0 %v991
    %1405 = vmatpush.msra.mxu0 %v990
    %1406 = vmatpush.msra.mxu0 %v989
    %1407 = vmatmul.f32.gmra.mxu0 %v1349
    %v1408 = vpop.f32.mrf.mxu0
    %v1409 = vadd.f32 %v1041, %v1408
    %1410 = vdwg.mxu0
    %v1411 = vadd.f32 %v1343, %v1369
    %v1412 = vxor.u32 %v1411, 2147483648
    %v1413 = vmul.f32 %v1412, 1.442695
    %v1414 = vpow.pop %v1413
    %v1415 = vadd.f32 %v1414, 1.0
    %v1416 = vrcp.pop %v1415
    %v1417 = vmul.f32 %v1415, %v1416
    %v1418 = vsub.f32 1.0, %v1417
    %v1419 = vmul.f32 %v1416, %v1418
    %v1420 = vadd.f32 %v1416, %v1419
    %vm1421 = vweird.f32 %v1415
    %vm1422 = vweird.f32 %v1416
    %vm1423 = vmor %vm1421, %vm1422
    %v1424 = vsel %vm1423, %v1416, %v1420
    %v1425 = vand.u32 2147483647, %v1415
    %vm1426 = vcmp.eq.f32.partialorder %v1425, 8.507059e+37
    %v1427 = vand.u32 %v1415, 2147483648
    %v1428 = vor.u32 1.1754944e-38, %v1427
    %v1429 = vsel %vm1426, %v1428, %v1424
    %v1430 = vmul.f32 1.0, %v1429
    %v1431 = vadd.f32 %v1345, %v1389
    %v1432 = vxor.u32 %v1431, 2147483648
    %v1433 = vmul.f32 %v1432, 1.442695
    %v1434 = vpow.pop %v1433
    %v1435 = vadd.f32 %v1434, 1.0
    %v1436 = vrcp.pop %v1435
    %v1437 = vmul.f32 %v1435, %v1436
    %v1438 = vsub.f32 1.0, %v1437
    %v1439 = vmul.f32 %v1436, %v1438
    %v1440 = vadd.f32 %v1436, %v1439
    %vm1441 = vweird.f32 %v1435
    %vm1442 = vweird.f32 %v1436
    %vm1443 = vmor %vm1441, %vm1442
    %v1444 = vsel %vm1443, %v1436, %v1440
    %v1445 = vand.u32 2147483647, %v1435
    %vm1446 = vcmp.eq.f32.partialorder %v1445, 8.507059e+37
    %v1447 = vand.u32 %v1435, 2147483648
    %v1448 = vor.u32 1.1754944e-38, %v1447
    %v1449 = vsel %vm1446, %v1448, %v1444
    %v1450 = vmul.f32 1.0, %v1449
    %v1451 = vmul.f32 %v1430, %v1409
    %v1452 = vadd.f32 %v1347, %v1451
    %v1453 = vtanh.pop %v1452
    %v1454 = vsub.f32 1.0, %v1450
    %v1455 = vmul.f32 %v1454, %v1453
    %v1456 = vmul.f32 %v1450, %v1341
    %v1457 = vadd.f32 %v1455, %v1456
    %s1458 = scalar_lea.vmem %s3, 6
    %v1459 = vld [vmem:[%s1458] sm:$0x3]
    %s1460 = scalar_lea.vmem %s3, 22
    %v1461 = vld [vmem:[%s1460] sm:$0x3]
    %s1462 = scalar_lea.vmem %s3, 38
    %v1463 = vld [vmem:[%s1462] sm:$0x3]
    %v1465 = vsel %vm53, %v1457, 0
    %1467 = vmatpush.msra.mxu0 0.0
    %1468 = vmatpush.msra.mxu0 0.0
    %1469 = vmatpush.msra.mxu0 0.0
    %1470 = vmatpush.msra.mxu0 0.0
    %1471 = vmatpush.msra.mxu0 0.0
    %1472 = vmatpush.msra.mxu0 0.0
    %1473 = vmatpush.msra.mxu0 0.0
    %1474 = vmatpush.msra.mxu0 0.0
    %1475 = vmatpush.msra.mxu0 0.0
    %1476 = vmatpush.msra.mxu0 0.0
    %1477 = vmatpush.msra.mxu0 0.0
    %1478 = vmatpush.msra.mxu0 0.0
    %1479 = vmatpush.msra.mxu0 %v982
    %1480 = vmatpush.msra.mxu0 %v981
    %1481 = vmatpush.msra.mxu0 %v980
    %1482 = vmatpush.msra.mxu0 %v979
    %1483 = vmatmul.f32.gmra.mxu0 %v1465
    %v1484 = vpop.f32.mrf.mxu0
    %v1485 = vadd.f32 0.0, %v1484
    %1486 = vdwg.mxu0
    %1487 = vmatpush.msra.mxu0 0.0
    %1488 = vmatpush.msra.mxu0 0.0
    %1489 = vmatpush.msra.mxu0 0.0
    %1490 = vmatpush.msra.mxu0 0.0
    %1491 = vmatpush.msra.mxu0 0.0
    %1492 = vmatpush.msra.mxu0 0.0
    %1493 = vmatpush.msra.mxu0 0.0
    %1494 = vmatpush.msra.mxu0 0.0
    %1495 = vmatpush.msra.mxu0 0.0
    %1496 = vmatpush.msra.mxu0 0.0
    %1497 = vmatpush.msra.mxu0 0.0
    %1498 = vmatpush.msra.mxu0 0.0
    %1499 = vmatpush.msra.mxu0 %v987
    %1500 = vmatpush.msra.mxu0 %v986
    %1501 = vmatpush.msra.mxu0 %v985
    %1502 = vmatpush.msra.mxu0 %v984
    %1503 = vmatmul.f32.gmra.mxu0 %v1465
    %v1504 = vpop.f32.mrf.mxu0
    %v1505 = vadd.f32 0.0, %v1504
    %1506 = vdwg.mxu0
    %1507 = vmatpush.msra.mxu0 0.0
    %1508 = vmatpush.msra.mxu0 0.0
    %1509 = vmatpush.msra.mxu0 0.0
    %1510 = vmatpush.msra.mxu0 0.0
    %1511 = vmatpush.msra.mxu0 0.0
    %1512 = vmatpush.msra.mxu0 0.0
    %1513 = vmatpush.msra.mxu0 0.0
    %1514 = vmatpush.msra.mxu0 0.0
    %1515 = vmatpush.msra.mxu0 0.0
    %1516 = vmatpush.msra.mxu0 0.0
    %1517 = vmatpush.msra.mxu0 0.0
    %1518 = vmatpush.msra.mxu0 0.0
    %1519 = vmatpush.msra.mxu0 %v992
    %1520 = vmatpush.msra.mxu0 %v991
    %1521 = vmatpush.msra.mxu0 %v990
    %1522 = vmatpush.msra.mxu0 %v989
    %1523 = vmatmul.f32.gmra.mxu0 %v1465
    %v1524 = vpop.f32.mrf.mxu0
    %v1525 = vadd.f32 %v1041, %v1524
    %1526 = vdwg.mxu0
    %v1527 = vadd.f32 %v1459, %v1485
    %v1528 = vxor.u32 %v1527, 2147483648
    %v1529 = vmul.f32 %v1528, 1.442695
    %v1530 = vpow.pop %v1529
    %v1531 = vadd.f32 %v1530, 1.0
    %v1532 = vrcp.pop %v1531
    %v1533 = vmul.f32 %v1531, %v1532
    %v1534 = vsub.f32 1.0, %v1533
    %v1535 = vmul.f32 %v1532, %v1534
    %v1536 = vadd.f32 %v1532, %v1535
    %vm1537 = vweird.f32 %v1531
    %vm1538 = vweird.f32 %v1532
    %vm1539 = vmor %vm1537, %vm1538
    %v1540 = vsel %vm1539, %v1532, %v1536
    %v1541 = vand.u32 2147483647, %v1531
    %vm1542 = vcmp.eq.f32.partialorder %v1541, 8.507059e+37
    %v1543 = vand.u32 %v1531, 2147483648
    %v1544 = vor.u32 1.1754944e-38, %v1543
    %v1545 = vsel %vm1542, %v1544, %v1540
    %v1546 = vmul.f32 1.0, %v1545
    %v1547 = vadd.f32 %v1461, %v1505
    %v1548 = vxor.u32 %v1547, 2147483648
    %v1549 = vmul.f32 %v1548, 1.442695
    %v1550 = vpow.pop %v1549
    %v1551 = vadd.f32 %v1550, 1.0
    %v1552 = vrcp.pop %v1551
    %v1553 = vmul.f32 %v1551, %v1552
    %v1554 = vsub.f32 1.0, %v1553
    %v1555 = vmul.f32 %v1552, %v1554
    %v1556 = vadd.f32 %v1552, %v1555
    %vm1557 = vweird.f32 %v1551
    %vm1558 = vweird.f32 %v1552
    %vm1559 = vmor %vm1557, %vm1558
    %v1560 = vsel %vm1559, %v1552, %v1556
    %v1561 = vand.u32 2147483647, %v1551
    %vm1562 = vcmp.eq.f32.partialorder %v1561, 8.507059e+37
    %v1563 = vand.u32 %v1551, 2147483648
    %v1564 = vor.u32 1.1754944e-38, %v1563
    %v1565 = vsel %vm1562, %v1564, %v1560
    %v1566 = vmul.f32 1.0, %v1565
    %v1567 = vmul.f32 %v1546, %v1525
    %v1568 = vadd.f32 %v1463, %v1567
    %v1569 = vtanh.pop %v1568
    %v1570 = vsub.f32 1.0, %v1566
    %v1571 = vmul.f32 %v1570, %v1569
    %v1572 = vmul.f32 %v1566, %v1457
    %v1573 = vadd.f32 %v1571, %v1572
    %s1574 = scalar_lea.vmem %s3, 4
    %v1575 = vld [vmem:[%s1574] sm:$0x3]
    %s1576 = scalar_lea.vmem %s3, 20
    %v1577 = vld [vmem:[%s1576] sm:$0x3]
    %s1578 = scalar_lea.vmem %s3, 36
    %v1579 = vld [vmem:[%s1578] sm:$0x3]
    %v1581 = vsel %vm53, %v1573, 0
    %1583 = vmatpush.msra.mxu0 0.0
    %1584 = vmatpush.msra.mxu0 0.0
    %1585 = vmatpush.msra.mxu0 0.0
    %1586 = vmatpush.msra.mxu0 0.0
    %1587 = vmatpush.msra.mxu0 0.0
    %1588 = vmatpush.msra.mxu0 0.0
    %1589 = vmatpush.msra.mxu0 0.0
    %1590 = vmatpush.msra.mxu0 0.0
    %1591 = vmatpush.msra.mxu0 0.0
    %1592 = vmatpush.msra.mxu0 0.0
    %1593 = vmatpush.msra.mxu0 0.0
    %1594 = vmatpush.msra.mxu0 0.0
    %1595 = vmatpush.msra.mxu0 %v982
    %1596 = vmatpush.msra.mxu0 %v981
    %1597 = vmatpush.msra.mxu0 %v980
    %1598 = vmatpush.msra.mxu0 %v979
    %1599 = vmatmul.f32.gmra.mxu0 %v1581
    %v1600 = vpop.f32.mrf.mxu0
    %v1601 = vadd.f32 0.0, %v1600
    %1602 = vdwg.mxu0
    %1603 = vmatpush.msra.mxu0 0.0
    %1604 = vmatpush.msra.mxu0 0.0
    %1605 = vmatpush.msra.mxu0 0.0
    %1606 = vmatpush.msra.mxu0 0.0
    %1607 = vmatpush.msra.mxu0 0.0
    %1608 = vmatpush.msra.mxu0 0.0
    %1609 = vmatpush.msra.mxu0 0.0
    %1610 = vmatpush.msra.mxu0 0.0
    %1611 = vmatpush.msra.mxu0 0.0
    %1612 = vmatpush.msra.mxu0 0.0
    %1613 = vmatpush.msra.mxu0 0.0
    %1614 = vmatpush.msra.mxu0 0.0
    %1615 = vmatpush.msra.mxu0 %v987
    %1616 = vmatpush.msra.mxu0 %v986
    %1617 = vmatpush.msra.mxu0 %v985
    %1618 = vmatpush.msra.mxu0 %v984
    %1619 = vmatmul.f32.gmra.mxu0 %v1581
    %v1620 = vpop.f32.mrf.mxu0
    %v1621 = vadd.f32 0.0, %v1620
    %1622 = vdwg.mxu0
    %1623 = vmatpush.msra.mxu0 0.0
    %1624 = vmatpush.msra.mxu0 0.0
    %1625 = vmatpush.msra.mxu0 0.0
    %1626 = vmatpush.msra.mxu0 0.0
    %1627 = vmatpush.msra.mxu0 0.0
    %1628 = vmatpush.msra.mxu0 0.0
    %1629 = vmatpush.msra.mxu0 0.0
    %1630 = vmatpush.msra.mxu0 0.0
    %1631 = vmatpush.msra.mxu0 0.0
    %1632 = vmatpush.msra.mxu0 0.0
    %1633 = vmatpush.msra.mxu0 0.0
    %1634 = vmatpush.msra.mxu0 0.0
    %1635 = vmatpush.msra.mxu0 %v992
    %1636 = vmatpush.msra.mxu0 %v991
    %1637 = vmatpush.msra.mxu0 %v990
    %1638 = vmatpush.msra.mxu0 %v989
    %1639 = vmatmul.f32.gmra.mxu0 %v1581
    %v1640 = vpop.f32.mrf.mxu0
    %v1641 = vadd.f32 %v1041, %v1640
    %1642 = vdwg.mxu0
    %v1643 = vadd.f32 %v1575, %v1601
    %v1644 = vxor.u32 %v1643, 2147483648
    %v1645 = vmul.f32 %v1644, 1.442695
    %v1646 = vpow.pop %v1645
    %v1647 = vadd.f32 %v1646, 1.0
    %v1648 = vrcp.pop %v1647
    %v1649 = vmul.f32 %v1647, %v1648
    %v1650 = vsub.f32 1.0, %v1649
    %v1651 = vmul.f32 %v1648, %v1650
    %v1652 = vadd.f32 %v1648, %v1651
    %vm1653 = vweird.f32 %v1647
    %vm1654 = vweird.f32 %v1648
    %vm1655 = vmor %vm1653, %vm1654
    %v1656 = vsel %vm1655, %v1648, %v1652
    %v1657 = vand.u32 2147483647, %v1647
    %vm1658 = vcmp.eq.f32.partialorder %v1657, 8.507059e+37
    %v1659 = vand.u32 %v1647, 2147483648
    %v1660 = vor.u32 1.1754944e-38, %v1659
    %v1661 = vsel %vm1658, %v1660, %v1656
    %v1662 = vmul.f32 1.0, %v1661
    %v1663 = vadd.f32 %v1577, %v1621
    %v1664 = vxor.u32 %v1663, 2147483648
    %v1665 = vmul.f32 %v1664, 1.442695
    %v1666 = vpow.pop %v1665
    %v1667 = vadd.f32 %v1666, 1.0
    %v1668 = vrcp.pop %v1667
    %v1669 = vmul.f32 %v1667, %v1668
    %v1670 = vsub.f32 1.0, %v1669
    %v1671 = vmul.f32 %v1668, %v1670
    %v1672 = vadd.f32 %v1668, %v1671
    %vm1673 = vweird.f32 %v1667
    %vm1674 = vweird.f32 %v1668
    %vm1675 = vmor %vm1673, %vm1674
    %v1676 = vsel %vm1675, %v1668, %v1672
    %v1677 = vand.u32 2147483647, %v1667
    %vm1678 = vcmp.eq.f32.partialorder %v1677, 8.507059e+37
    %v1679 = vand.u32 %v1667, 2147483648
    %v1680 = vor.u32 1.1754944e-38, %v1679
    %v1681 = vsel %vm1678, %v1680, %v1676
    %v1682 = vmul.f32 1.0, %v1681
    %v1683 = vmul.f32 %v1662, %v1641
    %v1684 = vadd.f32 %v1579, %v1683
    %v1685 = vtanh.pop %v1684
    %v1686 = vsub.f32 1.0, %v1682
    %v1687 = vmul.f32 %v1686, %v1685
    %v1688 = vmul.f32 %v1682, %v1573
    %v1689 = vadd.f32 %v1687, %v1688
    %s1690 = scalar_lea.vmem %s3, 2
    %v1691 = vld [vmem:[%s1690] sm:$0x3]
    %s1692 = scalar_lea.vmem %s3, 18
    %v1693 = vld [vmem:[%s1692] sm:$0x3]
    %s1694 = scalar_lea.vmem %s3, 34
    %v1695 = vld [vmem:[%s1694] sm:$0x3]
    %v1697 = vsel %vm53, %v1689, 0
    %1699 = vmatpush.msra.mxu0 0.0
    %1700 = vmatpush.msra.mxu0 0.0
    %1701 = vmatpush.msra.mxu0 0.0
    %1702 = vmatpush.msra.mxu0 0.0
    %1703 = vmatpush.msra.mxu0 0.0
    %1704 = vmatpush.msra.mxu0 0.0
    %1705 = vmatpush.msra.mxu0 0.0
    %1706 = vmatpush.msra.mxu0 0.0
    %1707 = vmatpush.msra.mxu0 0.0
    %1708 = vmatpush.msra.mxu0 0.0
    %1709 = vmatpush.msra.mxu0 0.0
    %1710 = vmatpush.msra.mxu0 0.0
    %1711 = vmatpush.msra.mxu0 %v982
    %1712 = vmatpush.msra.mxu0 %v981
    %1713 = vmatpush.msra.mxu0 %v980
    %1714 = vmatpush.msra.mxu0 %v979
    %1715 = vmatmul.f32.gmra.mxu0 %v1697
    %v1716 = vpop.f32.mrf.mxu0
    %v1717 = vadd.f32 0.0, %v1716
    %1718 = vdwg.mxu0
    %1719 = vmatpush.msra.mxu0 0.0
    %1720 = vmatpush.msra.mxu0 0.0
    %1721 = vmatpush.msra.mxu0 0.0
    %1722 = vmatpush.msra.mxu0 0.0
    %1723 = vmatpush.msra.mxu0 0.0
    %1724 = vmatpush.msra.mxu0 0.0
    %1725 = vmatpush.msra.mxu0 0.0
    %1726 = vmatpush.msra.mxu0 0.0
    %1727 = vmatpush.msra.mxu0 0.0
    %1728 = vmatpush.msra.mxu0 0.0
    %1729 = vmatpush.msra.mxu0 0.0
    %1730 = vmatpush.msra.mxu0 0.0
    %1731 = vmatpush.msra.mxu0 %v987
    %1732 = vmatpush.msra.mxu0 %v986
    %1733 = vmatpush.msra.mxu0 %v985
    %1734 = vmatpush.msra.mxu0 %v984
    %1735 = vmatmul.f32.gmra.mxu0 %v1697
    %v1736 = vpop.f32.mrf.mxu0
    %v1737 = vadd.f32 0.0, %v1736
    %1738 = vdwg.mxu0
    %1739 = vmatpush.msra.mxu0 0.0
    %1740 = vmatpush.msra.mxu0 0.0
    %1741 = vmatpush.msra.mxu0 0.0
    %1742 = vmatpush.msra.mxu0 0.0
    %1743 = vmatpush.msra.mxu0 0.0
    %1744 = vmatpush.msra.mxu0 0.0
    %1745 = vmatpush.msra.mxu0 0.0
    %1746 = vmatpush.msra.mxu0 0.0
    %1747 = vmatpush.msra.mxu0 0.0
    %1748 = vmatpush.msra.mxu0 0.0
    %1749 = vmatpush.msra.mxu0 0.0
    %1750 = vmatpush.msra.mxu0 0.0
    %1751 = vmatpush.msra.mxu0 %v992
    %1752 = vmatpush.msra.mxu0 %v991
    %1753 = vmatpush.msra.mxu0 %v990
    %1754 = vmatpush.msra.mxu0 %v989
    %1755 = vmatmul.f32.gmra.mxu0 %v1697
    %v1756 = vpop.f32.mrf.mxu0
    %v1757 = vadd.f32 %v1041, %v1756
    %1758 = vdwg.mxu0
    %v1759 = vadd.f32 %v1691, %v1717
    %v1760 = vxor.u32 %v1759, 2147483648
    %v1761 = vmul.f32 %v1760, 1.442695
    %v1762 = vpow.pop %v1761
    %v1763 = vadd.f32 %v1762, 1.0
    %v1764 = vrcp.pop %v1763
    %v1765 = vmul.f32 %v1763, %v1764
    %v1766 = vsub.f32 1.0, %v1765
    %v1767 = vmul.f32 %v1764, %v1766
    %v1768 = vadd.f32 %v1764, %v1767
    %vm1769 = vweird.f32 %v1763
    %vm1770 = vweird.f32 %v1764
    %vm1771 = vmor %vm1769, %vm1770
    %v1772 = vsel %vm1771, %v1764, %v1768
    %v1773 = vand.u32 2147483647, %v1763
    %vm1774 = vcmp.eq.f32.partialorder %v1773, 8.507059e+37
    %v1775 = vand.u32 %v1763, 2147483648
    %v1776 = vor.u32 1.1754944e-38, %v1775
    %v1777 = vsel %vm1774, %v1776, %v1772
    %v1778 = vmul.f32 1.0, %v1777
    %v1779 = vadd.f32 %v1693, %v1737
    %v1780 = vxor.u32 %v1779, 2147483648
    %v1781 = vmul.f32 %v1780, 1.442695
    %v1782 = vpow.pop %v1781
    %v1783 = vadd.f32 %v1782, 1.0
    %v1784 = vrcp.pop %v1783
    %v1785 = vmul.f32 %v1783, %v1784
    %v1786 = vsub.f32 1.0, %v1785
    %v1787 = vmul.f32 %v1784, %v1786
    %v1788 = vadd.f32 %v1784, %v1787
    %vm1789 = vweird.f32 %v1783
    %vm1790 = vweird.f32 %v1784
    %vm1791 = vmor %vm1789, %vm1790
    %v1792 = vsel %vm1791, %v1784, %v1788
    %v1793 = vand.u32 2147483647, %v1783
    %vm1794 = vcmp.eq.f32.partialorder %v1793, 8.507059e+37
    %v1795 = vand.u32 %v1783, 2147483648
    %v1796 = vor.u32 1.1754944e-38, %v1795
    %v1797 = vsel %vm1794, %v1796, %v1792
    %v1798 = vmul.f32 1.0, %v1797
    %v1799 = vmul.f32 %v1778, %v1757
    %v1800 = vadd.f32 %v1695, %v1799
    %v1801 = vtanh.pop %v1800
    %v1802 = vsub.f32 1.0, %v1798
    %v1803 = vmul.f32 %v1802, %v1801
    %v1804 = vmul.f32 %v1798, %v1689
    %v1805 = vadd.f32 %v1803, %v1804
    %v1806 = vld [vmem:[%s3] sm:$0x3]
    %s1807 = scalar_lea.vmem %s3, 16
    %v1808 = vld [vmem:[%s1807] sm:$0x3]
    %s1809 = scalar_lea.vmem %s3, 32
    %v1810 = vld [vmem:[%s1809] sm:$0x3]
    %v1812 = vsel %vm53, %v1805, 0
    %1814 = vmatpush.msra.mxu0 0.0
    %1815 = vmatpush.msra.mxu0 0.0
    %1816 = vmatpush.msra.mxu0 0.0
    %1817 = vmatpush.msra.mxu0 0.0
    %1818 = vmatpush.msra.mxu0 0.0
    %1819 = vmatpush.msra.mxu0 0.0
    %1820 = vmatpush.msra.mxu0 0.0
    %1821 = vmatpush.msra.mxu0 0.0
    %1822 = vmatpush.msra.mxu0 0.0
    %1823 = vmatpush.msra.mxu0 0.0
    %1824 = vmatpush.msra.mxu0 0.0
    %1825 = vmatpush.msra.mxu0 0.0
    %1826 = vmatpush.msra.mxu0 %v982
    %1827 = vmatpush.msra.mxu0 %v981
    %1828 = vmatpush.msra.mxu0 %v980
    %1829 = vmatpush.msra.mxu0 %v979
    %1830 = vmatmul.f32.gmra.mxu0 %v1812
    %v1831 = vpop.f32.mrf.mxu0
    %v1832 = vadd.f32 0.0, %v1831
    %1833 = vdwg.mxu0
    %1834 = vmatpush.msra.mxu0 0.0
    %1835 = vmatpush.msra.mxu0 0.0
    %1836 = vmatpush.msra.mxu0 0.0
    %1837 = vmatpush.msra.mxu0 0.0
    %1838 = vmatpush.msra.mxu0 0.0
    %1839 = vmatpush.msra.mxu0 0.0
    %1840 = vmatpush.msra.mxu0 0.0
    %1841 = vmatpush.msra.mxu0 0.0
    %1842 = vmatpush.msra.mxu0 0.0
    %1843 = vmatpush.msra.mxu0 0.0
    %1844 = vmatpush.msra.mxu0 0.0
    %1845 = vmatpush.msra.mxu0 0.0
    %1846 = vmatpush.msra.mxu0 %v987
    %1847 = vmatpush.msra.mxu0 %v986
    %1848 = vmatpush.msra.mxu0 %v985
    %1849 = vmatpush.msra.mxu0 %v984
    %1850 = vmatmul.f32.gmra.mxu0 %v1812
    %v1851 = vpop.f32.mrf.mxu0
    %v1852 = vadd.f32 0.0, %v1851
    %1853 = vdwg.mxu0
    %1854 = vmatpush.msra.mxu0 0.0
    %1855 = vmatpush.msra.mxu0 0.0
    %1856 = vmatpush.msra.mxu0 0.0
    %1857 = vmatpush.msra.mxu0 0.0
    %1858 = vmatpush.msra.mxu0 0.0
    %1859 = vmatpush.msra.mxu0 0.0
    %1860 = vmatpush.msra.mxu0 0.0
    %1861 = vmatpush.msra.mxu0 0.0
    %1862 = vmatpush.msra.mxu0 0.0
    %1863 = vmatpush.msra.mxu0 0.0
    %1864 = vmatpush.msra.mxu0 0.0
    %1865 = vmatpush.msra.mxu0 0.0
    %1866 = vmatpush.msra.mxu0 %v992
    %1867 = vmatpush.msra.mxu0 %v991
    %1868 = vmatpush.msra.mxu0 %v990
    %1869 = vmatpush.msra.mxu0 %v989
    %1870 = vmatmul.f32.gmra.mxu0 %v1812
    %v1871 = vpop.f32.mrf.mxu0
    %v1872 = vadd.f32 %v1041, %v1871
    %1873 = vdwg.mxu0
    %v1874 = vadd.f32 %v1806, %v1832
    %v1875 = vxor.u32 %v1874, 2147483648
    %v1876 = vmul.f32 %v1875, 1.442695
    %v1877 = vpow.pop %v1876
    %v1878 = vadd.f32 %v1877, 1.0
    %v1879 = vrcp.pop %v1878
    %v1880 = vmul.f32 %v1878, %v1879
    %v1881 = vsub.f32 1.0, %v1880
    %v1882 = vmul.f32 %v1879, %v1881
    %v1883 = vadd.f32 %v1879, %v1882
    %vm1884 = vweird.f32 %v1878
    %vm1885 = vweird.f32 %v1879
    %vm1886 = vmor %vm1884, %vm1885
    %v1887 = vsel %vm1886, %v1879, %v1883
    %v1888 = vand.u32 2147483647, %v1878
    %vm1889 = vcmp.eq.f32.partialorder %v1888, 8.507059e+37
    %v1890 = vand.u32 %v1878, 2147483648
    %v1891 = vor.u32 1.1754944e-38, %v1890
    %v1892 = vsel %vm1889, %v1891, %v1887
    %v1893 = vmul.f32 1.0, %v1892
    %v1894 = vadd.f32 %v1808, %v1852
    %v1895 = vxor.u32 %v1894, 2147483648
    %v1896 = vmul.f32 %v1895, 1.442695
    %v1897 = vpow.pop %v1896
    %v1898 = vadd.f32 %v1897, 1.0
    %v1899 = vrcp.pop %v1898
    %v1900 = vmul.f32 %v1898, %v1899
    %v1901 = vsub.f32 1.0, %v1900
    %v1902 = vmul.f32 %v1899, %v1901
    %v1903 = vadd.f32 %v1899, %v1902
    %vm1904 = vweird.f32 %v1898
    %vm1905 = vweird.f32 %v1899
    %vm1906 = vmor %vm1904, %vm1905
    %v1907 = vsel %vm1906, %v1899, %v1903
    %v1908 = vand.u32 2147483647, %v1898
    %vm1909 = vcmp.eq.f32.partialorder %v1908, 8.507059e+37
    %v1910 = vand.u32 %v1898, 2147483648
    %v1911 = vor.u32 1.1754944e-38, %v1910
    %v1912 = vsel %vm1909, %v1911, %v1907
    %v1913 = vmul.f32 1.0, %v1912
    %v1914 = vmul.f32 %v1893, %v1872
    %v1915 = vadd.f32 %v1810, %v1914
    %v1916 = vtanh.pop %v1915
    %v1917 = vsub.f32 1.0, %v1913
    %v1918 = vmul.f32 %v1917, %v1916
    %v1919 = vmul.f32 %v1913, %v1805
    %v1920 = vadd.f32 %v1918, %v1919
    %v1921 = vld [vmem:[%s6] sm:$0xff]
    %v1922 = vld [vmem:[%s6 + $0x8] sm:$0xff]
    %v1923 = vld [vmem:[%s6 + $0x10] sm:$0xff]
    %v1924 = vld [vmem:[%s6 + $0x18] sm:$0xff]
    %v1925 = vld [vmem:[%s7] sm:$0xff]
    %v1926 = vld [vmem:[%s7 + $0x8] sm:$0xff]
    %v1927 = vld [vmem:[%s7 + $0x10] sm:$0xff]
    %v1928 = vld [vmem:[%s7 + $0x18] sm:$0xff]
    %v1930 = vsel %vm53, %v1920, 0
    %1932 = vmatpush.msra.mxu0 0.0
    %1933 = vmatpush.msra.mxu0 0.0
    %1934 = vmatpush.msra.mxu0 0.0
    %1935 = vmatpush.msra.mxu0 0.0
    %1936 = vmatpush.msra.mxu0 0.0
    %1937 = vmatpush.msra.mxu0 0.0
    %1938 = vmatpush.msra.mxu0 0.0
    %1939 = vmatpush.msra.mxu0 0.0
    %1940 = vmatpush.msra.mxu0 0.0
    %1941 = vmatpush.msra.mxu0 0.0
    %1942 = vmatpush.msra.mxu0 0.0
    %1943 = vmatpush.msra.mxu0 0.0
    %1944 = vmatpush.msra.mxu0 %v1928
    %1945 = vmatpush.msra.mxu0 %v1927
    %1946 = vmatpush.msra.mxu0 %v1926
    %1947 = vmatpush.msra.mxu0 %v1925
    %1948 = vmatmul.f32.gmra.mxu0 %v1930
    %v1949 = vpop.f32.mrf.mxu0
    %v1950 = vadd.f32 0.0, %v1949
    %1951 = vdwg.mxu0
    %v1953 = vsel %vm53, %v978, 0
    %1955 = vmatpush.msra.mxu0 0.0
    %1956 = vmatpush.msra.mxu0 0.0
    %1957 = vmatpush.msra.mxu0 0.0
    %1958 = vmatpush.msra.mxu0 0.0
    %1959 = vmatpush.msra.mxu0 0.0
    %1960 = vmatpush.msra.mxu0 0.0
    %1961 = vmatpush.msra.mxu0 0.0
    %1962 = vmatpush.msra.mxu0 0.0
    %1963 = vmatpush.msra.mxu0 0.0
    %1964 = vmatpush.msra.mxu0 0.0
    %1965 = vmatpush.msra.mxu0 0.0
    %1966 = vmatpush.msra.mxu0 0.0
    %1967 = vmatpush.msra.mxu0 %v1924
    %1968 = vmatpush.msra.mxu0 %v1923
    %1969 = vmatpush.msra.mxu0 %v1922
    %1970 = vmatpush.msra.mxu0 %v1921
    %1971 = vmatmul.f32.gmra.mxu0 %v1953
    %v1972 = vpop.f32.mrf.mxu0
    %v1973 = vadd.f32 %v1950, %v1972
    %1974 = vdwg.mxu0
    %v1975 = vld [vmem:[%s8] sm:$0x1]
    %v1977 = vperm.slane %v1975, 0
    %v1979 = vadd.f32 %v1973, %v1977
    %vm1980 = vcmask 25600
    %1981 = vst.msk [vmem:[#allocation2] sm:$0x3] %vm1980, %v1979
    // Predicated region
    $region38: #{bigru_attention_forward.1} parent=1 // pred_check
      _
    $region39: #{bigru_attention_forward.1} parent=1 // pred_check_branch
      %1983 = sbr.rel (0) target = $region41
    $region40: #{bigru_attention_forward.1} parent=1 // pred_region
      %1985 = vsyncadd [#allocation3], 0
      %s1987 = sshll.u32 [#allocation2], 4
      %s1988 = int_to_ptr.vmem [resolvable:$true] %s1987
      %s1989 = sshll.u32 %s9, 4
      %s1990 = int_to_ptr.hbm [resolvable:$true] %s1989
      %1992 = dma.vmem_to_hbm [thread:$0]  %s1988, 32, %s1990, [#allocation3]
    $region41: #{bigru_attention_forward.1} parent=1 // pred_fallthru
      _
    // Predicated region
    $region42: #{bigru_attention_forward.1} parent=1 // pred_check
      _
    $region43: #{bigru_attention_forward.1} parent=1 // pred_check_branch
      %1994 = sbr.rel (0) target = $region45
    $region44: #{bigru_attention_forward.1} parent=1 // pred_region
      %1996 = dma.done [#allocation3], 32
    $region45: #{bigru_attention_forward.1} parent=1 // pred_fallthru
      _
    %1997 = vsyncpa [#allocation3], 1

</llo_original>
